<compile_context>
chip_gen: v6e
topology: v6e:2x2x1
jax: 0.10.0
libtpu: 0.0.40
codegen_flags: <defaults>
</compile_context>

<pallas_src>
import functools

import jax
import jax.numpy as jnp
from jax import lax
from jax.experimental import pallas as pl
from jax.experimental.pallas import tpu as pltpu

EPS = 1e-5                  # PyTorch BatchNorm2d default eps
TP_MAX = 8192               # lane tile over the flattened N*H*W axis (multiple of 128)
ACT_DTYPE = jnp.bfloat16    # storage dtype of inter-kernel activations (HBM traffic)


# ----------------------------------------------------------------------------
# Helpers
# ----------------------------------------------------------------------------
def _choose_tp(p):
    """Largest multiple of 128 <= min(TP_MAX, p); if p < 128 use the full dim."""
    if p <= 128:
        return p
    return min(TP_MAX, (p // 128) * 128)


def _grid_split(p, tp):
    """Split the tile axis over (up to) 2 cores when it divides evenly."""
    ntiles = pl.cdiv(p, tp)
    n_cores = 2 if (ntiles >= 2 and ntiles % 2 == 0) else 1
    return n_cores, ntiles // n_cores


def _bn_fold(stats, p, gamma, beta):
    """Fold training-mode BatchNorm into per-channel scale/shift (f32)."""
    mean = stats[:, 0] / p
    var = stats[:, 1] / p - mean * mean
    var = jnp.maximum(var, 0.0)          # guard E[x^2]-E[x]^2 cancellation
    scale = gamma * lax.rsqrt(var + EPS)
    shift = beta - mean * scale
    return scale, shift


def _stride_cp(x_cp, n, h, w, s):
    """Spatial subsample for a strided 1x1 conv (pointwise BN/ReLU commutes)."""
    if s == 1:
        return x_cp, h, w
    c = x_cp.shape[0]
    x4 = x_cp.reshape(c, n, h, w)[:, :, ::s, ::s]
    hs, ws = x4.shape[2], x4.shape[3]
    return x4.reshape(c, n * hs * ws), hs, ws


# ----------------------------------------------------------------------------
# Kernel A / conv0: (optional BN+ReLU prologue) -> matmul -> stats epilogue.
# Optionally writes the conv output (conv0 needs it; block pass A does not).
# ----------------------------------------------------------------------------
def _make_conv_stats_kernel(p_total, tp, tiles_per_core, with_bn, write_out):
    need_mask = (p_total % tp) != 0      # static: tail mask only if P % tp != 0

    def kernel(*refs):
        refs = list(refs)
        x_ref = refs.pop(0)
        if with_bn:
            scale_ref = refs.pop(0)
            shift_ref = refs.pop(0)
        w_ref = refs.pop(0)
        if write_out:
            y_ref = refs.pop(0)
        stats_ref = refs.pop(0)
        sum_acc, sq_acc = refs           # f32 VMEM scratch accumulators

        c = pl.program_id(0)             # "parallel" core-split axis
        i = pl.program_id(1)             # "arbitrary" tile / reduction axis
        tile = c * tiles_per_core + i    # global tile index

        @pl.when(i == 0)
        def _():
            sum_acc[...] = jnp.zeros_like(sum_acc)
            sq_acc[...] = jnp.zeros_like(sq_acc)

        x = x_ref[...].astype(jnp.float32)
        if with_bn:
            # folded BatchNorm (scale/shift) + ReLU: one FMA + max
            x = jnp.maximum(x * scale_ref[...] + shift_ref[...], 0.0)

        y = jnp.dot(w_ref[...].astype(jnp.float32), x,
                    preferred_element_type=jnp.float32)          # (Cout, tp)
        if write_out:
            y_ref[...] = y.astype(y_ref.dtype)

        ym = y
        if need_mask:
            col = lax.broadcasted_iota(jnp.int32, y.shape, 1)
            ym = jnp.where(col < (p_total - tile * tp), y, 0.0)
        sum_acc[...] += jnp.sum(ym, axis=1, keepdims=True)
        sq_acc[...] += jnp.sum(ym * ym, axis=1, keepdims=True)

        @pl.when(i == tiles_per_core - 1)
        def _():
            stats_ref[...] = jnp.concatenate([sum_acc[...], sq_acc[...]], axis=1)

    return kernel


def fused_conv_stats(x_cp, w, scale=None, shift=None, write_out=True):
    """y = W @ relu(scale*x + shift)   (or W @ x when scale is None).

    x_cp: (Cin, P) channel-major.  w: (Cout, Cin) (PyTorch 1x1 conv layout).
    Returns (y or None, stats (Cout, 2) f32 = [sum, sumsq] of y over P).
    """
    cin, p = x_cp.shape
    cout = w.shape[0]
    tp = _choose_tp(p)
    n_cores, tiles_per_core = _grid_split(p, tp)
    with_bn = scale is not None

    act_map = lambda c, i: (0, c * tiles_per_core + i)
    const_map = lambda c, i: (0, 0)

    in_specs = [pl.BlockSpec((cin, tp), act_map)]
    args = [x_cp]
    if with_bn:
        in_specs += [pl.BlockSpec((cin, 1), const_map),
                     pl.BlockSpec((cin, 1), const_map)]
        args += [scale.reshape(cin, 1), shift.reshape(cin, 1)]
    in_specs.append(pl.BlockSpec((cout, cin), const_map))
    args.append(w.astype(jnp.float32))

    out_shape = []
    out_specs = []
    if write_out:
        out_shape.append(jax.ShapeDtypeStruct((cout, p), ACT_DTYPE))
        out_specs.append(pl.BlockSpec((cout, tp), act_map))
    out_shape.append(jax.ShapeDtypeStruct((n_cores, cout, 2), jnp.float32))
    out_specs.append(pl.BlockSpec((None, cout, 2), lambda c, i: (c, 0, 0)))

    results = pl.pallas_call(
        _make_conv_stats_kernel(p, tp, tiles_per_core, with_bn, write_out),
        out_shape=tuple(out_shape),
        grid=(n_cores, tiles_per_core),
        in_specs=in_specs,
        out_specs=tuple(out_specs),
        scratch_shapes=[pltpu.VMEM((cout, 1), jnp.float32),
                        pltpu.VMEM((cout, 1), jnp.float32)],
        compiler_params=pltpu.CompilerParams(
            dimension_semantics=("parallel", "arbitrary")),
    )(*args)

    if write_out:
        y, stats_parts = results
    else:
        (stats_parts,) = results
        y = None
    return y, jnp.sum(stats_parts, axis=0)


# ----------------------------------------------------------------------------
# Kernel B: full basic block (conv1 recomputed in-kernel so h never hits HBM),
# bn2+relu, conv2, shortcut add, block-output stats epilogue.
# ----------------------------------------------------------------------------
def _make_block_kernel(p_total, tp, tiles_per_core, with_shortcut):
    need_mask = (p_total % tp) != 0

    def kernel(*refs):
        refs = list(refs)
        x_ref = refs.pop(0)
        scale1_ref = refs.pop(0)
        shift1_ref = refs.pop(0)
        w1_ref = refs.pop(0)
        scale2_ref = refs.pop(0)
        shift2_ref = refs.pop(0)
        w2_ref = refs.pop(0)
        if with_shortcut:
            ws_ref = refs.pop(0)
        o_ref = refs.pop(0)
        stats_ref = refs.pop(0)
        sum_acc, sq_acc = refs

        c = pl.program_id(0)
        i = pl.program_id(1)
        tile = c * tiles_per_core + i

        @pl.when(i == 0)
        def _():
            sum_acc[...] = jnp.zeros_like(sum_acc)
            sq_acc[...] = jnp.zeros_like(sq_acc)

        a = jnp.maximum(x_ref[...].astype(jnp.float32) * scale1_ref[...]
                        + shift1_ref[...], 0.0)               # relu(bn1(x))
        h = jnp.dot(w1_ref[...].astype(jnp.float32), a,
                    preferred_element_type=jnp.float32)       # conv1 (kept in VMEM only)
        h2 = jnp.maximum(h * scale2_ref[...] + shift2_ref[...], 0.0)   # relu(bn2(h))
        out = jnp.dot(w2_ref[...].astype(jnp.float32), h2,
                      preferred_element_type=jnp.float32)     # conv2
        if with_shortcut:
            out = out + jnp.dot(ws_ref[...].astype(jnp.float32), a,
                                preferred_element_type=jnp.float32)
        else:
            out = out + a                                     # noop shortcut (ni == nf)
        o_ref[...] = out.astype(o_ref.dtype)

        om = out
        if need_mask:
            col = lax.broadcasted_iota(jnp.int32, out.shape, 1)
            om = jnp.where(col < (p_total - tile * tp), out, 0.0)
        sum_acc[...] += jnp.sum(om, axis=1, keepdims=True)
        sq_acc[...] += jnp.sum(om * om, axis=1, keepdims=True)

        @pl.when(i == tiles_per_core - 1)
        def _():
            stats_ref[...] = jnp.concatenate([sum_acc[...], sq_acc[...]], axis=1)

    return kernel


def fused_block(x_cp, scale1, shift1, w1, scale2, shift2, w2, w_short):
    ni, p = x_cp.shape
    nf = w1.shape[0]
    cout = w2.shape[0]
    tp = _choose_tp(p)
    n_cores, tiles_per_core = _grid_split(p, tp)
    with_shortcut = w_short is not None

    act_map = lambda c, i: (0, c * tiles_per_core + i)
    const_map = lambda c, i: (0, 0)

    def vspec(ch):
        return pl.BlockSpec((ch, 1), const_map)

    in_specs = [pl.BlockSpec((ni, tp), act_map), vspec(ni), vspec(ni),
                pl.BlockSpec((nf, ni), const_map),
                vspec(nf), vspec(nf),
                pl.BlockSpec((cout, nf), const_map)]
    args = [x_cp, scale1.reshape(ni, 1), shift1.reshape(ni, 1),
            w1.astype(jnp.float32),
            scale2.reshape(nf, 1), shift2.reshape(nf, 1),
            w2.astype(jnp.float32)]
    if with_shortcut:
        in_specs.append(pl.BlockSpec((cout, ni), const_map))
        args.append(w_short.astype(jnp.float32))

    out, stats_parts = pl.pallas_call(
        _make_block_kernel(p, tp, tiles_per_core, with_shortcut),
        out_shape=(jax.ShapeDtypeStruct((cout, p), ACT_DTYPE),
                   jax.ShapeDtypeStruct((n_cores, cout, 2), jnp.float32)),
        grid=(n_cores, tiles_per_core),
        in_specs=in_specs,
        out_specs=(pl.BlockSpec((cout, tp), act_map),
                   pl.BlockSpec((None, cout, 2), lambda c, i: (c, 0, 0))),
        scratch_shapes=[pltpu.VMEM((cout, 1), jnp.float32),
                        pltpu.VMEM((cout, 1), jnp.float32)],
        compiler_params=pltpu.CompilerParams(
            dimension_semantics=("parallel", "arbitrary")),
    )(*args)
    return out, jnp.sum(stats_parts, axis=0)


# ----------------------------------------------------------------------------
# WideResNet parameters + forward
# ----------------------------------------------------------------------------
def init_wide_resnet(key, num_groups, n_blocks, in_channels, num_classes,
                     k=1, start_nf=16, stride=1):
    def conv_w(key, cout, cin):
        # kaiming-like init for a 1x1 conv (bias=False)
        return jax.random.normal(key, (cout, cin), jnp.float32) * jnp.sqrt(2.0 / cin)

    n_channels = [start_nf] + [start_nf * 2 ** i * k for i in range(num_groups)]
    keys = iter(jax.random.split(key, 64))

    params = {"conv0": conv_w(next(keys), n_channels[0], in_channels)}
    blocks, meta = [], []
    for i in range(num_groups):
        g_stride = 1 if i == 0 else stride
        for j in range(n_blocks):
            ni = n_channels[i] if j == 0 else n_channels[i + 1]
            nf = n_channels[i + 1]
            s = g_stride if j == 0 else 1
            blocks.append({
                "bn1_g": jnp.ones((ni,), jnp.float32),
                "bn1_b": jnp.zeros((ni,), jnp.float32),
                "w1": conv_w(next(keys), nf, ni),
                "bn2_g": jnp.ones((nf,), jnp.float32),
                "bn2_b": jnp.zeros((nf,), jnp.float32),
                "w2": conv_w(next(keys), nf, nf),
                "w_short": conv_w(next(keys), nf, ni) if ni != nf else None,
            })
            meta.append({"stride": s})
    params["blocks"] = blocks
    if num_classes is not None:
        c_last = n_channels[-1]
        params["head_bn_g"] = jnp.ones((c_last,), jnp.float32)
        params["head_bn_b"] = jnp.zeros((c_last,), jnp.float32)
        params["head_w"] = conv_w(next(keys), num_classes, c_last)
    return params, meta, num_classes


def wide_resnet_forward(x_nchw, params, block_meta, num_classes):
    n, c_in, h, w = x_nchw.shape
    # NCHW -> channel-major (C, N*H*W); one cheap XLA transpose at the boundary.
    x_cp = jnp.transpose(x_nchw, (1, 0, 2, 3)).reshape(c_in, n * h * w)
    x_cp = x_cp.astype(jnp.float32)      # first layer input kept f32 (read once)

    # conv0 (no BN/ReLU before it); its epilogue yields stats for block0's bn1.
    z_cp, stats = fused_conv_stats(x_cp, params["conv0"], write_out=True)
    p_cur = z_cp.shape[1]

    for bp, meta in zip(params["blocks"], block_meta):
        s = meta["stride"]
        # bn1 folded from stats of the previous kernel's output (full resolution,
        # matching PyTorch: BN runs before the strided conv subsamples).
        scale1, shift1 = _bn_fold(stats, p_cur, bp["bn1_g"], bp["bn1_b"])
        zs_cp, h, w = _stride_cp(z_cp, n, h, w, s)   # ks=1, pad=0: every s-th pixel
        # Pass A: stats of h = conv1(relu(bn1(x))) without writing h to HBM.
        _, stats_h = fused_conv_stats(zs_cp, bp["w1"], scale1, shift1,
                                      write_out=False)
        p_str = zs_cp.shape[1]
        scale2, shift2 = _bn_fold(stats_h, p_str, bp["bn2_g"], bp["bn2_b"])
        # Pass B: recompute conv1 branch in-kernel, conv2 + shortcut + stats(out).
        # Dropout omitted: drop_p=0.0 so nn.Dropout is never created in the spec.
        z_cp, stats = fused_block(zs_cp, scale1, shift1, bp["w1"],
                                  scale2, shift2, bp["w2"], bp["w_short"])
        p_cur = p_str

    if num_classes is None:
        c = z_cp.shape[0]
        return jnp.transpose(z_cp.reshape(c, n, h, w), (1, 0, 2, 3))  # back to NCHW

    # Head: AdaptiveAvgPool2d(1) -> BN -> ReLU -> 1x1 conv -> Flatten.
    # Only N (=2) columns remain: run in plain JAX/XLA (a Pallas call would pad 64x).
    c_last = z_cp.shape[0]
    pooled = jnp.mean(z_cp.reshape(c_last, n, h * w).astype(jnp.float32),
                      axis=2)                                    # (C, N)
    mean = jnp.mean(pooled, axis=1, keepdims=True)
    var = jnp.mean((pooled - mean) ** 2, axis=1, keepdims=True)  # biased, train-mode BN
    scale = params["head_bn_g"][:, None] * lax.rsqrt(var + EPS)
    shift = params["head_bn_b"][:, None] - mean * scale
    act = jnp.maximum(pooled * scale + shift, 0.0)
    logits = params["head_w"] @ act                              # (num_classes, N)
    return logits.T                                              # Flatten -> (N, classes)


if __name__ == "__main__":
    key = jax.random.PRNGKey(0)
    k_param, k_x = jax.random.split(key)

    # Small config: WideResNet(num_groups=2, N=1, in_channels=4,
    #                          num_classes=10, k=1, start_nf=8, stride=2)
    params, block_meta, num_classes = init_wide_resnet(
        k_param, num_groups=2, n_blocks=1, in_channels=4,
        num_classes=10, k=1, start_nf=8, stride=2)

    x = jax.random.normal(k_x, (2, 4, 16, 16), jnp.float32)  # NCHW like PyTorch

    fwd = jax.jit(functools.partial(wide_resnet_forward,
                                    block_meta=block_meta,
                                    num_classes=num_classes))
    out = jax.block_until_ready(fwd(x, params))

    assert out.shape == (2, 10), out.shape
    assert bool(jnp.all(jnp.isfinite(out)))
    print("KERNEL_OK")
</pallas_src>

<mosaic_0001>
module attributes {stable_mosaic.version = 11 : i64} {
  func.func @kernel(%arg0: i32, %arg1: i32, %arg2: memref<4x512xf32, #tpu.memory_space<vmem>>, %arg3: memref<8x4xf32, #tpu.memory_space<vmem>>, %arg4: memref<8x512xbf16, #tpu.memory_space<vmem>>, %arg5: memref<1x8x2xf32, #tpu.memory_space<vmem>>, %arg6: memref<8x1xf32, #tpu.memory_space<vmem>>, %arg7: memref<8x1xf32, #tpu.memory_space<vmem>>) attributes {dimension_semantics = [#tpu.dimension_semantics<parallel>, #tpu.dimension_semantics<arbitrary>], iteration_bounds = array<i64: 1, 1>, scalar_prefetch = 0 : i64, scratch_operands = 2 : i64, tpu.core_type = #tpu.core_type<tc>, window_params = [{transform_indices = @transform_0, window_bounds = array<i64: 4, 512>}, {pipeline_mode = #tpu.pipeline_mode<synchronous>, transform_indices = @transform_1, window_bounds = array<i64: 8, 4>}, {transform_indices = @transform_2, window_bounds = array<i64: 8, 512>}, {transform_indices = @transform_3, window_bounds = array<i64: 1, 8, 2>}]} {
    %c0_i32 = arith.constant 0 : i32
    %0 = arith.cmpi eq, %arg1, %c0_i32 : i32
    %1 = arith.extui %0 : i1 to i32
    %c0_i32_0 = arith.constant 0 : i32
    %2 = arith.cmpi ne, %1, %c0_i32_0 : i32
    scf.if %2 {
      %cst_18 = arith.constant 0.000000e+00 : f32
      %22 = vector.broadcast %cst_18 : f32 to vector<8x1xf32>
      %c0_19 = arith.constant 0 : index
      %c0_20 = arith.constant 0 : index
      %23 = vector.load %arg6[%c0_19, %c0_20] : memref<8x1xf32, #tpu.memory_space<vmem>>, vector<8x1xf32>
      tpu.vector_store %arg6[%c0_19, %c0_20], %22 {strides = array<i32>} : memref<8x1xf32, #tpu.memory_space<vmem>>, vector<8x1xf32>,
      %cst_21 = arith.constant 0.000000e+00 : f32
      %24 = vector.broadcast %cst_21 : f32 to vector<8x1xf32>
      %c0_22 = arith.constant 0 : index
      %c0_23 = arith.constant 0 : index
      %25 = vector.load %arg7[%c0_22, %c0_23] : memref<8x1xf32, #tpu.memory_space<vmem>>, vector<8x1xf32>
      tpu.vector_store %arg7[%c0_22, %c0_23], %24 {strides = array<i32>} : memref<8x1xf32, #tpu.memory_space<vmem>>, vector<8x1xf32>,
    } else {
    }
    %c0 = arith.constant 0 : index
    %c0_1 = arith.constant 0 : index
    %3 = vector.load %arg2[%c0, %c0_1] : memref<4x512xf32, #tpu.memory_space<vmem>>, vector<4x512xf32>
    %c0_2 = arith.constant 0 : index
    %c0_3 = arith.constant 0 : index
    %4 = vector.load %arg3[%c0_2, %c0_3] : memref<8x4xf32, #tpu.memory_space<vmem>>, vector<8x4xf32>
    %cst = arith.constant dense<0.000000e+00> : vector<8x512xf32>
    %5 = tpu.matmul %4, %3, %cst {dimension_numbers = #tpu.dot_dimension_numbers<[1], [0], [0], [1], [0, 0, 1, 1], [], []>} : vector<8x4xf32>, vector<4x512xf32>, vector<8x512xf32> -> vector<8x512xf32>
    %6 = arith.truncf %5 : vector<8x512xf32> to vector<8x512xbf16>
    %c0_4 = arith.constant 0 : index
    %c0_5 = arith.constant 0 : index
    %7 = vector.load %arg4[%c0_4, %c0_5] : memref<8x512xbf16, #tpu.memory_space<vmem>>, vector<8x512xbf16>
    tpu.vector_store %arg4[%c0_4, %c0_5], %6 {strides = array<i32>} : memref<8x512xbf16, #tpu.memory_space<vmem>>, vector<8x512xbf16>,
    %c0_6 = arith.constant 0 : index
    %c0_7 = arith.constant 0 : index
    %8 = vector.load %arg6[%c0_6, %c0_7] : memref<8x1xf32, #tpu.memory_space<vmem>>, vector<8x1xf32>
    %cst_8 = arith.constant dense<0.000000e+00> : vector<8xf32>
    %9 = vector.multi_reduction <add>, %5, %cst_8 [1] : vector<8x512xf32> to vector<8xf32>
    %10 = vector.shape_cast %9 : vector<8xf32> to vector<8x1xf32>
    %11 = arith.addf %8, %10 : vector<8x1xf32>
    %c0_9 = arith.constant 0 : index
    %c0_10 = arith.constant 0 : index
    %12 = vector.load %arg6[%c0_9, %c0_10] : memref<8x1xf32, #tpu.memory_space<vmem>>, vector<8x1xf32>
    tpu.vector_store %arg6[%c0_9, %c0_10], %11 {strides = array<i32>} : memref<8x1xf32, #tpu.memory_space<vmem>>, vector<8x1xf32>,
    %c0_11 = arith.constant 0 : index
    %c0_12 = arith.constant 0 : index
    %13 = vector.load %arg7[%c0_11, %c0_12] : memref<8x1xf32, #tpu.memory_space<vmem>>, vector<8x1xf32>
    %14 = arith.mulf %5, %5 : vector<8x512xf32>
    %cst_13 = arith.constant dense<0.000000e+00> : vector<8xf32>
    %15 = vector.multi_reduction <add>, %14, %cst_13 [1] : vector<8x512xf32> to vector<8xf32>
    %16 = vector.shape_cast %15 : vector<8xf32> to vector<8x1xf32>
    %17 = arith.addf %13, %16 : vector<8x1xf32>
    %c0_14 = arith.constant 0 : index
    %c0_15 = arith.constant 0 : index
    %18 = vector.load %arg7[%c0_14, %c0_15] : memref<8x1xf32, #tpu.memory_space<vmem>>, vector<8x1xf32>
    tpu.vector_store %arg7[%c0_14, %c0_15], %17 {strides = array<i32>} : memref<8x1xf32, #tpu.memory_space<vmem>>, vector<8x1xf32>,
    %c0_i32_16 = arith.constant 0 : i32
    %19 = arith.cmpi eq, %arg1, %c0_i32_16 : i32
    %20 = arith.extui %19 : i1 to i32
    %c0_i32_17 = arith.constant 0 : i32
    %21 = arith.cmpi ne, %20, %c0_i32_17 : i32
    scf.if %21 {
      %c0_18 = arith.constant 0 : index
      %c0_19 = arith.constant 0 : index
      %22 = vector.load %arg6[%c0_18, %c0_19] : memref<8x1xf32, #tpu.memory_space<vmem>>, vector<8x1xf32>
      %c0_20 = arith.constant 0 : index
      %c0_21 = arith.constant 0 : index
      %23 = vector.load %arg7[%c0_20, %c0_21] : memref<8x1xf32, #tpu.memory_space<vmem>>, vector<8x1xf32>
      %24 = tpu.concatenate %22, %23 in 1 : vector<8x1xf32>, vector<8x1xf32> -> vector<8x2xf32>
      %c0_22 = arith.constant 0 : index
      %c0_23 = arith.constant 0 : index
      %c0_24 = arith.constant 0 : index
      %25 = vector.load %arg5[%c0_22, %c0_23, %c0_24] : memref<1x8x2xf32, #tpu.memory_space<vmem>>, vector<1x8x2xf32>
      %26 = vector.shape_cast %25 : vector<1x8x2xf32> to vector<8x2xf32>
      %27 = vector.shape_cast %24 : vector<8x2xf32> to vector<1x8x2xf32>
      tpu.vector_store %arg5[%c0_22, %c0_23, %c0_24], %27 {strides = array<i32>} : memref<1x8x2xf32, #tpu.memory_space<vmem>>, vector<1x8x2xf32>,
    } else {
    }
    return
  }
  func.func @transform_0(%arg0: i32, %arg1: i32) -> (i32, i32) {
    %c1_i32 = arith.constant 1 : i32
    %0 = arith.muli %arg0, %c1_i32 : i32
    %1 = arith.addi %0, %arg1 : i32
    %c0_i32 = arith.constant 0 : i32
    %c0_i32_0 = arith.constant 0 : i32
    return %c0_i32, %1 : i32, i32
  }
  func.func @transform_1(%arg0: i32, %arg1: i32) -> (i32, i32) {
    %c0_i32 = arith.constant 0 : i32
    %c0_i32_0 = arith.constant 0 : i32
    %c0_i32_1 = arith.constant 0 : i32
    return %c0_i32, %c0_i32_0 : i32, i32
  }
  func.func @transform_2(%arg0: i32, %arg1: i32) -> (i32, i32) {
    %c1_i32 = arith.constant 1 : i32
    %0 = arith.muli %arg0, %c1_i32 : i32
    %1 = arith.addi %0, %arg1 : i32
    %c0_i32 = arith.constant 0 : i32
    %c0_i32_0 = arith.constant 0 : i32
    return %c0_i32, %1 : i32, i32
  }
  func.func @transform_3(%arg0: i32, %arg1: i32) -> (i32, i32, i32) {
    %c0_i32 = arith.constant 0 : i32
    %c0_i32_0 = arith.constant 0 : i32
    %c0_i32_1 = arith.constant 0 : i32
    return %arg0, %c0_i32, %c0_i32_0 : i32, i32, i32
  }
}

module attributes {stable_mosaic.version = 11 : i64} {
  func.func @kernel(%arg0: i32, %arg1: i32, %arg2: memref<8x512xbf16, #tpu.memory_space<vmem>>, %arg3: memref<8x1xf32, #tpu.memory_space<vmem>>, %arg4: memref<8x1xf32, #tpu.memory_space<vmem>>, %arg5: memref<8x8xf32, #tpu.memory_space<vmem>>, %arg6: memref<1x8x2xf32, #tpu.memory_space<vmem>>, %arg7: memref<8x1xf32, #tpu.memory_space<vmem>>, %arg8: memref<8x1xf32, #tpu.memory_space<vmem>>) attributes {dimension_semantics = [#tpu.dimension_semantics<parallel>, #tpu.dimension_semantics<arbitrary>], iteration_bounds = array<i64: 1, 1>, scalar_prefetch = 0 : i64, scratch_operands = 2 : i64, tpu.core_type = #tpu.core_type<tc>, window_params = [{transform_indices = @transform_0, window_bounds = array<i64: 8, 512>}, {pipeline_mode = #tpu.pipeline_mode<synchronous>, transform_indices = @transform_1, window_bounds = array<i64: 8, 1>}, {pipeline_mode = #tpu.pipeline_mode<synchronous>, transform_indices = @transform_2, window_bounds = array<i64: 8, 1>}, {pipeline_mode = #tpu.pipeline_mode<synchronous>, transform_indices = @transform_3, window_bounds = array<i64: 8, 8>}, {transform_indices = @transform_4, window_bounds = array<i64: 1, 8, 2>}]} {
    %c0_i32 = arith.constant 0 : i32
    %0 = arith.cmpi eq, %arg1, %c0_i32 : i32
    %1 = arith.extui %0 : i1 to i32
    %c0_i32_0 = arith.constant 0 : i32
    %2 = arith.cmpi ne, %1, %c0_i32_0 : i32
    scf.if %2 {
      %cst_21 = arith.constant 0.000000e+00 : f32
      %29 = vector.broadcast %cst_21 : f32 to vector<8x1xf32>
      %c0_22 = arith.constant 0 : index
      %c0_23 = arith.constant 0 : index
      %30 = vector.load %arg7[%c0_22, %c0_23] : memref<8x1xf32, #tpu.memory_space<vmem>>, vector<8x1xf32>
      tpu.vector_store %arg7[%c0_22, %c0_23], %29 {strides = array<i32>} : memref<8x1xf32, #tpu.memory_space<vmem>>, vector<8x1xf32>,
      %cst_24 = arith.constant 0.000000e+00 : f32
      %31 = vector.broadcast %cst_24 : f32 to vector<8x1xf32>
      %c0_25 = arith.constant 0 : index
      %c0_26 = arith.constant 0 : index
      %32 = vector.load %arg8[%c0_25, %c0_26] : memref<8x1xf32, #tpu.memory_space<vmem>>, vector<8x1xf32>
      tpu.vector_store %arg8[%c0_25, %c0_26], %31 {strides = array<i32>} : memref<8x1xf32, #tpu.memory_space<vmem>>, vector<8x1xf32>,
    } else {
    }
    %c0 = arith.constant 0 : index
    %c0_1 = arith.constant 0 : index
    %3 = vector.load %arg2[%c0, %c0_1] : memref<8x512xbf16, #tpu.memory_space<vmem>>, vector<8x512xbf16>
    %4 = arith.extf %3 : vector<8x512xbf16> to vector<8x512xf32>
    %c0_2 = arith.constant 0 : index
    %c0_3 = arith.constant 0 : index
    %5 = vector.load %arg3[%c0_2, %c0_3] : memref<8x1xf32, #tpu.memory_space<vmem>>, vector<8x1xf32>
    %6 = vector.broadcast %5 : vector<8x1xf32> to vector<8x512xf32>
    %7 = arith.mulf %4, %6 : vector<8x512xf32>
    %c0_4 = arith.constant 0 : index
    %c0_5 = arith.constant 0 : index
    %8 = vector.load %arg4[%c0_4, %c0_5] : memref<8x1xf32, #tpu.memory_space<vmem>>, vector<8x1xf32>
    %9 = vector.broadcast %8 : vector<8x1xf32> to vector<8x512xf32>
    %10 = arith.addf %7, %9 : vector<8x512xf32>
    %cst = arith.constant 0.000000e+00 : f32
    %11 = vector.broadcast %cst : f32 to vector<8x512xf32>
    %12 = arith.maximumf %10, %11 : vector<8x512xf32>
    %c0_6 = arith.constant 0 : index
    %c0_7 = arith.constant 0 : index
    %13 = vector.load %arg5[%c0_6, %c0_7] : memref<8x8xf32, #tpu.memory_space<vmem>>, vector<8x8xf32>
    %cst_8 = arith.constant dense<0.000000e+00> : vector<8x512xf32>
    %14 = tpu.matmul %13, %12, %cst_8 {dimension_numbers = #tpu.dot_dimension_numbers<[1], [0], [0], [1], [0, 0, 1, 1], [], []>} : vector<8x8xf32>, vector<8x512xf32>, vector<8x512xf32> -> vector<8x512xf32>
    %c0_9 = arith.constant 0 : index
    %c0_10 = arith.constant 0 : index
    %15 = vector.load %arg7[%c0_9, %c0_10] : memref<8x1xf32, #tpu.memory_space<vmem>>, vector<8x1xf32>
    %cst_11 = arith.constant dense<0.000000e+00> : vector<8xf32>
    %16 = vector.multi_reduction <add>, %14, %cst_11 [1] : vector<8x512xf32> to vector<8xf32>
    %17 = vector.shape_cast %16 : vector<8xf32> to vector<8x1xf32>
    %18 = arith.addf %15, %17 : vector<8x1xf32>
    %c0_12 = arith.constant 0 : index
    %c0_13 = arith.constant 0 : index
    %19 = vector.load %arg7[%c0_12, %c0_13] : memref<8x1xf32, #tpu.memory_space<vmem>>, vector<8x1xf32>
    tpu.vector_store %arg7[%c0_12, %c0_13], %18 {strides = array<i32>} : memref<8x1xf32, #tpu.memory_space<vmem>>, vector<8x1xf32>,
    %c0_14 = arith.constant 0 : index
    %c0_15 = arith.constant 0 : index
    %20 = vector.load %arg8[%c0_14, %c0_15] : memref<8x1xf32, #tpu.memory_space<vmem>>, vector<8x1xf32>
    %21 = arith.mulf %14, %14 : vector<8x512xf32>
    %cst_16 = arith.constant dense<0.000000e+00> : vector<8xf32>
    %22 = vector.multi_reduction <add>, %21, %cst_16 [1] : vector<8x512xf32> to vector<8xf32>
    %23 = vector.shape_cast %22 : vector<8xf32> to vector<8x1xf32>
    %24 = arith.addf %20, %23 : vector<8x1xf32>
    %c0_17 = arith.constant 0 : index
    %c0_18 = arith.constant 0 : index
    %25 = vector.load %arg8[%c0_17, %c0_18] : memref<8x1xf32, #tpu.memory_space<vmem>>, vector<8x1xf32>
    tpu.vector_store %arg8[%c0_17, %c0_18], %24 {strides = array<i32>} : memref<8x1xf32, #tpu.memory_space<vmem>>, vector<8x1xf32>,
    %c0_i32_19 = arith.constant 0 : i32
    %26 = arith.cmpi eq, %arg1, %c0_i32_19 : i32
    %27 = arith.extui %26 : i1 to i32
    %c0_i32_20 = arith.constant 0 : i32
    %28 = arith.cmpi ne, %27, %c0_i32_20 : i32
    scf.if %28 {
      %c0_21 = arith.constant 0 : index
      %c0_22 = arith.constant 0 : index
      %29 = vector.load %arg7[%c0_21, %c0_22] : memref<8x1xf32, #tpu.memory_space<vmem>>, vector<8x1xf32>
      %c0_23 = arith.constant 0 : index
      %c0_24 = arith.constant 0 : index
      %30 = vector.load %arg8[%c0_23, %c0_24] : memref<8x1xf32, #tpu.memory_space<vmem>>, vector<8x1xf32>
      %31 = tpu.concatenate %29, %30 in 1 : vector<8x1xf32>, vector<8x1xf32> -> vector<8x2xf32>
      %c0_25 = arith.constant 0 : index
      %c0_26 = arith.constant 0 : index
      %c0_27 = arith.constant 0 : index
      %32 = vector.load %arg6[%c0_25, %c0_26, %c0_27] : memref<1x8x2xf32, #tpu.memory_space<vmem>>, vector<1x8x2xf32>
      %33 = vector.shape_cast %32 : vector<1x8x2xf32> to vector<8x2xf32>
      %34 = vector.shape_cast %31 : vector<8x2xf32> to vector<1x8x2xf32>
      tpu.vector_store %arg6[%c0_25, %c0_26, %c0_27], %34 {strides = array<i32>} : memref<1x8x2xf32, #tpu.memory_space<vmem>>, vector<1x8x2xf32>,
    } else {
    }
    return
  }
  func.func @transform_0(%arg0: i32, %arg1: i32) -> (i32, i32) {
    %c1_i32 = arith.constant 1 : i32
    %0 = arith.muli %arg0, %c1_i32 : i32
    %1 = arith.addi %0, %arg1 : i32
    %c0_i32 = arith.constant 0 : i32
    %c0_i32_0 = arith.constant 0 : i32
    return %c0_i32, %1 : i32, i32
  }
  func.func @transform_1(%arg0: i32, %arg1: i32) -> (i32, i32) {
    %c0_i32 = arith.constant 0 : i32
    %c0_i32_0 = arith.constant 0 : i32
    %c0_i32_1 = arith.constant 0 : i32
    return %c0_i32, %c0_i32_0 : i32, i32
  }
  func.func @transform_2(%arg0: i32, %arg1: i32) -> (i32, i32) {
    %c0_i32 = arith.constant 0 : i32
    %c0_i32_0 = arith.constant 0 : i32
    %c0_i32_1 = arith.constant 0 : i32
    return %c0_i32, %c0_i32_0 : i32, i32
  }
  func.func @transform_3(%arg0: i32, %arg1: i32) -> (i32, i32) {
    %c0_i32 = arith.constant 0 : i32
    %c0_i32_0 = arith.constant 0 : i32
    %c0_i32_1 = arith.constant 0 : i32
    return %c0_i32, %c0_i32_0 : i32, i32
  }
  func.func @transform_4(%arg0: i32, %arg1: i32) -> (i32, i32, i32) {
    %c0_i32 = arith.constant 0 : i32
    %c0_i32_0 = arith.constant 0 : i32
    %c0_i32_1 = arith.constant 0 : i32
    return %arg0, %c0_i32, %c0_i32_0 : i32, i32, i32
  }
}

module attributes {stable_mosaic.version = 11 : i64} {
  func.func @kernel(%arg0: i32, %arg1: i32, %arg2: memref<8x512xbf16, #tpu.memory_space<vmem>>, %arg3: memref<8x1xf32, #tpu.memory_space<vmem>>, %arg4: memref<8x1xf32, #tpu.memory_space<vmem>>, %arg5: memref<8x8xf32, #tpu.memory_space<vmem>>, %arg6: memref<8x1xf32, #tpu.memory_space<vmem>>, %arg7: memref<8x1xf32, #tpu.memory_space<vmem>>, %arg8: memref<8x8xf32, #tpu.memory_space<vmem>>, %arg9: memref<8x512xbf16, #tpu.memory_space<vmem>>, %arg10: memref<1x8x2xf32, #tpu.memory_space<vmem>>, %arg11: memref<8x1xf32, #tpu.memory_space<vmem>>, %arg12: memref<8x1xf32, #tpu.memory_space<vmem>>) attributes {dimension_semantics = [#tpu.dimension_semantics<parallel>, #tpu.dimension_semantics<arbitrary>], iteration_bounds = array<i64: 1, 1>, scalar_prefetch = 0 : i64, scratch_operands = 2 : i64, tpu.core_type = #tpu.core_type<tc>, window_params = [{transform_indices = @transform_0, window_bounds = array<i64: 8, 512>}, {pipeline_mode = #tpu.pipeline_mode<synchronous>, transform_indices = @transform_1, window_bounds = array<i64: 8, 1>}, {pipeline_mode = #tpu.pipeline_mode<synchronous>, transform_indices = @transform_2, window_bounds = array<i64: 8, 1>}, {pipeline_mode = #tpu.pipeline_mode<synchronous>, transform_indices = @transform_3, window_bounds = array<i64: 8, 8>}, {pipeline_mode = #tpu.pipeline_mode<synchronous>, transform_indices = @transform_4, window_bounds = array<i64: 8, 1>}, {pipeline_mode = #tpu.pipeline_mode<synchronous>, transform_indices = @transform_5, window_bounds = array<i64: 8, 1>}, {pipeline_mode = #tpu.pipeline_mode<synchronous>, transform_indices = @transform_6, window_bounds = array<i64: 8, 8>}, {transform_indices = @transform_7, window_bounds = array<i64: 8, 512>}, {transform_indices = @transform_8, window_bounds = array<i64: 1, 8, 2>}]} {
    %c0_i32 = arith.constant 0 : i32
    %0 = arith.cmpi eq, %arg1, %c0_i32 : i32
    %1 = arith.extui %0 : i1 to i32
    %c0_i32_0 = arith.constant 0 : i32
    %2 = arith.cmpi ne, %1, %c0_i32_0 : i32
    scf.if %2 {
      %cst_31 = arith.constant 0.000000e+00 : f32
      %42 = vector.broadcast %cst_31 : f32 to vector<8x1xf32>
      %c0_32 = arith.constant 0 : index
      %c0_33 = arith.constant 0 : index
      %43 = vector.load %arg11[%c0_32, %c0_33] : memref<8x1xf32, #tpu.memory_space<vmem>>, vector<8x1xf32>
      tpu.vector_store %arg11[%c0_32, %c0_33], %42 {strides = array<i32>} : memref<8x1xf32, #tpu.memory_space<vmem>>, vector<8x1xf32>,
      %cst_34 = arith.constant 0.000000e+00 : f32
      %44 = vector.broadcast %cst_34 : f32 to vector<8x1xf32>
      %c0_35 = arith.constant 0 : index
      %c0_36 = arith.constant 0 : index
      %45 = vector.load %arg12[%c0_35, %c0_36] : memref<8x1xf32, #tpu.memory_space<vmem>>, vector<8x1xf32>
      tpu.vector_store %arg12[%c0_35, %c0_36], %44 {strides = array<i32>} : memref<8x1xf32, #tpu.memory_space<vmem>>, vector<8x1xf32>,
    } else {
    }
    %c0 = arith.constant 0 : index
    %c0_1 = arith.constant 0 : index
    %3 = vector.load %arg2[%c0, %c0_1] : memref<8x512xbf16, #tpu.memory_space<vmem>>, vector<8x512xbf16>
    %4 = arith.extf %3 : vector<8x512xbf16> to vector<8x512xf32>
    %c0_2 = arith.constant 0 : index
    %c0_3 = arith.constant 0 : index
    %5 = vector.load %arg3[%c0_2, %c0_3] : memref<8x1xf32, #tpu.memory_space<vmem>>, vector<8x1xf32>
    %6 = vector.broadcast %5 : vector<8x1xf32> to vector<8x512xf32>
    %7 = arith.mulf %4, %6 : vector<8x512xf32>
    %c0_4 = arith.constant 0 : index
    %c0_5 = arith.constant 0 : index
    %8 = vector.load %arg4[%c0_4, %c0_5] : memref<8x1xf32, #tpu.memory_space<vmem>>, vector<8x1xf32>
    %9 = vector.broadcast %8 : vector<8x1xf32> to vector<8x512xf32>
    %10 = arith.addf %7, %9 : vector<8x512xf32>
    %cst = arith.constant 0.000000e+00 : f32
    %11 = vector.broadcast %cst : f32 to vector<8x512xf32>
    %12 = arith.maximumf %10, %11 : vector<8x512xf32>
    %c0_6 = arith.constant 0 : index
    %c0_7 = arith.constant 0 : index
    %13 = vector.load %arg5[%c0_6, %c0_7] : memref<8x8xf32, #tpu.memory_space<vmem>>, vector<8x8xf32>
    %cst_8 = arith.constant dense<0.000000e+00> : vector<8x512xf32>
    %14 = tpu.matmul %13, %12, %cst_8 {dimension_numbers = #tpu.dot_dimension_numbers<[1], [0], [0], [1], [0, 0, 1, 1], [], []>} : vector<8x8xf32>, vector<8x512xf32>, vector<8x512xf32> -> vector<8x512xf32>
    %c0_9 = arith.constant 0 : index
    %c0_10 = arith.constant 0 : index
    %15 = vector.load %arg6[%c0_9, %c0_10] : memref<8x1xf32, #tpu.memory_space<vmem>>, vector<8x1xf32>
    %16 = vector.broadcast %15 : vector<8x1xf32> to vector<8x512xf32>
    %17 = arith.mulf %14, %16 : vector<8x512xf32>
    %c0_11 = arith.constant 0 : index
    %c0_12 = arith.constant 0 : index
    %18 = vector.load %arg7[%c0_11, %c0_12] : memref<8x1xf32, #tpu.memory_space<vmem>>, vector<8x1xf32>
    %19 = vector.broadcast %18 : vector<8x1xf32> to vector<8x512xf32>
    %20 = arith.addf %17, %19 : vector<8x512xf32>
    %cst_13 = arith.constant 0.000000e+00 : f32
    %21 = vector.broadcast %cst_13 : f32 to vector<8x512xf32>
    %22 = arith.maximumf %20, %21 : vector<8x512xf32>
    %c0_14 = arith.constant 0 : index
    %c0_15 = arith.constant 0 : index
    %23 = vector.load %arg8[%c0_14, %c0_15] : memref<8x8xf32, #tpu.memory_space<vmem>>, vector<8x8xf32>
    %cst_16 = arith.constant dense<0.000000e+00> : vector<8x512xf32>
    %24 = tpu.matmul %23, %22, %cst_16 {dimension_numbers = #tpu.dot_dimension_numbers<[1], [0], [0], [1], [0, 0, 1, 1], [], []>} : vector<8x8xf32>, vector<8x512xf32>, vector<8x512xf32> -> vector<8x512xf32>
    %25 = arith.addf %24, %12 : vector<8x512xf32>
    %26 = arith.truncf %25 : vector<8x512xf32> to vector<8x512xbf16>
    %c0_17 = arith.constant 0 : index
    %c0_18 = arith.constant 0 : index
    %27 = vector.load %arg9[%c0_17, %c0_18] : memref<8x512xbf16, #tpu.memory_space<vmem>>, vector<8x512xbf16>
    tpu.vector_store %arg9[%c0_17, %c0_18], %26 {strides = array<i32>} : memref<8x512xbf16, #tpu.memory_space<vmem>>, vector<8x512xbf16>,
    %c0_19 = arith.constant 0 : index
    %c0_20 = arith.constant 0 : index
    %28 = vector.load %arg11[%c0_19, %c0_20] : memref<8x1xf32, #tpu.memory_space<vmem>>, vector<8x1xf32>
    %cst_21 = arith.constant dense<0.000000e+00> : vector<8xf32>
    %29 = vector.multi_reduction <add>, %25, %cst_21 [1] : vector<8x512xf32> to vector<8xf32>
    %30 = vector.shape_cast %29 : vector<8xf32> to vector<8x1xf32>
    %31 = arith.addf %28, %30 : vector<8x1xf32>
    %c0_22 = arith.constant 0 : index
    %c0_23 = arith.constant 0 : index
    %32 = vector.load %arg11[%c0_22, %c0_23] : memref<8x1xf32, #tpu.memory_space<vmem>>, vector<8x1xf32>
    tpu.vector_store %arg11[%c0_22, %c0_23], %31 {strides = array<i32>} : memref<8x1xf32, #tpu.memory_space<vmem>>, vector<8x1xf32>,
    %c0_24 = arith.constant 0 : index
    %c0_25 = arith.constant 0 : index
    %33 = vector.load %arg12[%c0_24, %c0_25] : memref<8x1xf32, #tpu.memory_space<vmem>>, vector<8x1xf32>
    %34 = arith.mulf %25, %25 : vector<8x512xf32>
    %cst_26 = arith.constant dense<0.000000e+00> : vector<8xf32>
    %35 = vector.multi_reduction <add>, %34, %cst_26 [1] : vector<8x512xf32> to vector<8xf32>
    %36 = vector.shape_cast %35 : vector<8xf32> to vector<8x1xf32>
    %37 = arith.addf %33, %36 : vector<8x1xf32>
    %c0_27 = arith.constant 0 : index
    %c0_28 = arith.constant 0 : index
    %38 = vector.load %arg12[%c0_27, %c0_28] : memref<8x1xf32, #tpu.memory_space<vmem>>, vector<8x1xf32>
    tpu.vector_store %arg12[%c0_27, %c0_28], %37 {strides = array<i32>} : memref<8x1xf32, #tpu.memory_space<vmem>>, vector<8x1xf32>,
    %c0_i32_29 = arith.constant 0 : i32
    %39 = arith.cmpi eq, %arg1, %c0_i32_29 : i32
    %40 = arith.extui %39 : i1 to i32
    %c0_i32_30 = arith.constant 0 : i32
    %41 = arith.cmpi ne, %40, %c0_i32_30 : i32
    scf.if %41 {
      %c0_31 = arith.constant 0 : index
      %c0_32 = arith.constant 0 : index
      %42 = vector.load %arg11[%c0_31, %c0_32] : memref<8x1xf32, #tpu.memory_space<vmem>>, vector<8x1xf32>
      %c0_33 = arith.constant 0 : index
      %c0_34 = arith.constant 0 : index
      %43 = vector.load %arg12[%c0_33, %c0_34] : memref<8x1xf32, #tpu.memory_space<vmem>>, vector<8x1xf32>
      %44 = tpu.concatenate %42, %43 in 1 : vector<8x1xf32>, vector<8x1xf32> -> vector<8x2xf32>
      %c0_35 = arith.constant 0 : index
      %c0_36 = arith.constant 0 : index
      %c0_37 = arith.constant 0 : index
      %45 = vector.load %arg10[%c0_35, %c0_36, %c0_37] : memref<1x8x2xf32, #tpu.memory_space<vmem>>, vector<1x8x2xf32>
      %46 = vector.shape_cast %45 : vector<1x8x2xf32> to vector<8x2xf32>
      %47 = vector.shape_cast %44 : vector<8x2xf32> to vector<1x8x2xf32>
      tpu.vector_store %arg10[%c0_35, %c0_36, %c0_37], %47 {strides = array<i32>} : memref<1x8x2xf32, #tpu.memory_space<vmem>>, vector<1x8x2xf32>,
    } else {
    }
    return
  }
  func.func @transform_0(%arg0: i32, %arg1: i32) -> (i32, i32) {
    %c1_i32 = arith.constant 1 : i32
    %0 = arith.muli %arg0, %c1_i32 : i32
    %1 = arith.addi %0, %arg1 : i32
    %c0_i32 = arith.constant 0 : i32
    %c0_i32_0 = arith.constant 0 : i32
    return %c0_i32, %1 : i32, i32
  }
  func.func @transform_1(%arg0: i32, %arg1: i32) -> (i32, i32) {
    %c0_i32 = arith.constant 0 : i32
    %c0_i32_0 = arith.constant 0 : i32
    %c0_i32_1 = arith.constant 0 : i32
    return %c0_i32, %c0_i32_0 : i32, i32
  }
  func.func @transform_2(%arg0: i32, %arg1: i32) -> (i32, i32) {
    %c0_i32 = arith.constant 0 : i32
    %c0_i32_0 = arith.constant 0 : i32
    %c0_i32_1 = arith.constant 0 : i32
    return %c0_i32, %c0_i32_0 : i32, i32
  }
  func.func @transform_3(%arg0: i32, %arg1: i32) -> (i32, i32) {
    %c0_i32 = arith.constant 0 : i32
    %c0_i32_0 = arith.constant 0 : i32
    %c0_i32_1 = arith.constant 0 : i32
    return %c0_i32, %c0_i32_0 : i32, i32
  }
  func.func @transform_4(%arg0: i32, %arg1: i32) -> (i32, i32) {
    %c0_i32 = arith.constant 0 : i32
    %c0_i32_0 = arith.constant 0 : i32
    %c0_i32_1 = arith.constant 0 : i32
    return %c0_i32, %c0_i32_0 : i32, i32
  }
  func.func @transform_5(%arg0: i32, %arg1: i32) -> (i32, i32) {
    %c0_i32 = arith.constant 0 : i32
    %c0_i32_0 = arith.constant 0 : i32
    %c0_i32_1 = arith.constant 0 : i32
    return %c0_i32, %c0_i32_0 : i32, i32
  }
  func.func @transform_6(%arg0: i32, %arg1: i32) -> (i32, i32) {
    %c0_i32 = arith.constant 0 : i32
    %c0_i32_0 = arith.constant 0 : i32
    %c0_i32_1 = arith.constant 0 : i32
    return %c0_i32, %c0_i32_0 : i32, i32
  }
  func.func @transform_7(%arg0: i32, %arg1: i32) -> (i32, i32) {
    %c1_i32 = arith.constant 1 : i32
    %0 = arith.muli %arg0, %c1_i32 : i32
    %1 = arith.addi %0, %arg1 : i32
    %c0_i32 = arith.constant 0 : i32
    %c0_i32_0 = arith.constant 0 : i32
    return %c0_i32, %1 : i32, i32
  }
  func.func @transform_8(%arg0: i32, %arg1: i32) -> (i32, i32, i32) {
    %c0_i32 = arith.constant 0 : i32
    %c0_i32_0 = arith.constant 0 : i32
    %c0_i32_1 = arith.constant 0 : i32
    return %arg0, %c0_i32, %c0_i32_0 : i32, i32, i32
  }
}

module attributes {stable_mosaic.version = 11 : i64} {
  func.func @kernel(%arg0: i32, %arg1: i32, %arg2: memref<8x128xbf16, #tpu.memory_space<vmem>>, %arg3: memref<8x1xf32, #tpu.memory_space<vmem>>, %arg4: memref<8x1xf32, #tpu.memory_space<vmem>>, %arg5: memref<16x8xf32, #tpu.memory_space<vmem>>, %arg6: memref<16x1xf32, #tpu.memory_space<vmem>>, %arg7: memref<16x1xf32, #tpu.memory_space<vmem>>, %arg8: memref<16x16xf32, #tpu.memory_space<vmem>>, %arg9: memref<16x8xf32, #tpu.memory_space<vmem>>, %arg10: memref<16x128xbf16, #tpu.memory_space<vmem>>, %arg11: memref<1x16x2xf32, #tpu.memory_space<vmem>>, %arg12: memref<16x1xf32, #tpu.memory_space<vmem>>, %arg13: memref<16x1xf32, #tpu.memory_space<vmem>>) attributes {dimension_semantics = [#tpu.dimension_semantics<parallel>, #tpu.dimension_semantics<arbitrary>], iteration_bounds = array<i64: 1, 1>, scalar_prefetch = 0 : i64, scratch_operands = 2 : i64, tpu.core_type = #tpu.core_type<tc>, window_params = [{transform_indices = @transform_0, window_bounds = array<i64: 8, 128>}, {pipeline_mode = #tpu.pipeline_mode<synchronous>, transform_indices = @transform_1, window_bounds = array<i64: 8, 1>}, {pipeline_mode = #tpu.pipeline_mode<synchronous>, transform_indices = @transform_2, window_bounds = array<i64: 8, 1>}, {pipeline_mode = #tpu.pipeline_mode<synchronous>, transform_indices = @transform_3, window_bounds = array<i64: 16, 8>}, {pipeline_mode = #tpu.pipeline_mode<synchronous>, transform_indices = @transform_4, window_bounds = array<i64: 16, 1>}, {pipeline_mode = #tpu.pipeline_mode<synchronous>, transform_indices = @transform_5, window_bounds = array<i64: 16, 1>}, {pipeline_mode = #tpu.pipeline_mode<synchronous>, transform_indices = @transform_6, window_bounds = array<i64: 16, 16>}, {pipeline_mode = #tpu.pipeline_mode<synchronous>, transform_indices = @transform_7, window_bounds = array<i64: 16, 8>}, {transform_indices = @transform_8, window_bounds = array<i64: 16, 128>}, {transform_indices = @transform_9, window_bounds = array<i64: 1, 16, 2>}]} {
    %c0_i32 = arith.constant 0 : i32
    %0 = arith.cmpi eq, %arg1, %c0_i32 : i32
    %1 = arith.extui %0 : i1 to i32
    %c0_i32_0 = arith.constant 0 : i32
    %2 = arith.cmpi ne, %1, %c0_i32_0 : i32
    scf.if %2 {
      %cst_34 = arith.constant 0.000000e+00 : f32
      %44 = vector.broadcast %cst_34 : f32 to vector<16x1xf32>
      %c0_35 = arith.constant 0 : index
      %c0_36 = arith.constant 0 : index
      %45 = vector.load %arg12[%c0_35, %c0_36] : memref<16x1xf32, #tpu.memory_space<vmem>>, vector<16x1xf32>
      tpu.vector_store %arg12[%c0_35, %c0_36], %44 {strides = array<i32>} : memref<16x1xf32, #tpu.memory_space<vmem>>, vector<16x1xf32>,
      %cst_37 = arith.constant 0.000000e+00 : f32
      %46 = vector.broadcast %cst_37 : f32 to vector<16x1xf32>
      %c0_38 = arith.constant 0 : index
      %c0_39 = arith.constant 0 : index
      %47 = vector.load %arg13[%c0_38, %c0_39] : memref<16x1xf32, #tpu.memory_space<vmem>>, vector<16x1xf32>
      tpu.vector_store %arg13[%c0_38, %c0_39], %46 {strides = array<i32>} : memref<16x1xf32, #tpu.memory_space<vmem>>, vector<16x1xf32>,
    } else {
    }
    %c0 = arith.constant 0 : index
    %c0_1 = arith.constant 0 : index
    %3 = vector.load %arg2[%c0, %c0_1] : memref<8x128xbf16, #tpu.memory_space<vmem>>, vector<8x128xbf16>
    %4 = arith.extf %3 : vector<8x128xbf16> to vector<8x128xf32>
    %c0_2 = arith.constant 0 : index
    %c0_3 = arith.constant 0 : index
    %5 = vector.load %arg3[%c0_2, %c0_3] : memref<8x1xf32, #tpu.memory_space<vmem>>, vector<8x1xf32>
    %6 = vector.broadcast %5 : vector<8x1xf32> to vector<8x128xf32>
    %7 = arith.mulf %4, %6 : vector<8x128xf32>
    %c0_4 = arith.constant 0 : index
    %c0_5 = arith.constant 0 : index
    %8 = vector.load %arg4[%c0_4, %c0_5] : memref<8x1xf32, #tpu.memory_space<vmem>>, vector<8x1xf32>
    %9 = vector.broadcast %8 : vector<8x1xf32> to vector<8x128xf32>
    %10 = arith.addf %7, %9 : vector<8x128xf32>
    %cst = arith.constant 0.000000e+00 : f32
    %11 = vector.broadcast %cst : f32 to vector<8x128xf32>
    %12 = arith.maximumf %10, %11 : vector<8x128xf32>
    %c0_6 = arith.constant 0 : index
    %c0_7 = arith.constant 0 : index
    %13 = vector.load %arg5[%c0_6, %c0_7] : memref<16x8xf32, #tpu.memory_space<vmem>>, vector<16x8xf32>
    %cst_8 = arith.constant dense<0.000000e+00> : vector<16x128xf32>
    %14 = tpu.matmul %13, %12, %cst_8 {dimension_numbers = #tpu.dot_dimension_numbers<[1], [0], [0], [1], [0, 0, 1, 1], [], []>} : vector<16x8xf32>, vector<8x128xf32>, vector<16x128xf32> -> vector<16x128xf32>
    %c0_9 = arith.constant 0 : index
    %c0_10 = arith.constant 0 : index
    %15 = vector.load %arg6[%c0_9, %c0_10] : memref<16x1xf32, #tpu.memory_space<vmem>>, vector<16x1xf32>
    %16 = vector.broadcast %15 : vector<16x1xf32> to vector<16x128xf32>
    %17 = arith.mulf %14, %16 : vector<16x128xf32>
    %c0_11 = arith.constant 0 : index
    %c0_12 = arith.constant 0 : index
    %18 = vector.load %arg7[%c0_11, %c0_12] : memref<16x1xf32, #tpu.memory_space<vmem>>, vector<16x1xf32>
    %19 = vector.broadcast %18 : vector<16x1xf32> to vector<16x128xf32>
    %20 = arith.addf %17, %19 : vector<16x128xf32>
    %cst_13 = arith.constant 0.000000e+00 : f32
    %21 = vector.broadcast %cst_13 : f32 to vector<16x128xf32>
    %22 = arith.maximumf %20, %21 : vector<16x128xf32>
    %c0_14 = arith.constant 0 : index
    %c0_15 = arith.constant 0 : index
    %23 = vector.load %arg8[%c0_14, %c0_15] : memref<16x16xf32, #tpu.memory_space<vmem>>, vector<16x16xf32>
    %cst_16 = arith.constant dense<0.000000e+00> : vector<16x128xf32>
    %24 = tpu.matmul %23, %22, %cst_16 {dimension_numbers = #tpu.dot_dimension_numbers<[1], [0], [0], [1], [0, 0, 1, 1], [], []>} : vector<16x16xf32>, vector<16x128xf32>, vector<16x128xf32> -> vector<16x128xf32>
    %c0_17 = arith.constant 0 : index
    %c0_18 = arith.constant 0 : index
    %25 = vector.load %arg9[%c0_17, %c0_18] : memref<16x8xf32, #tpu.memory_space<vmem>>, vector<16x8xf32>
    %cst_19 = arith.constant dense<0.000000e+00> : vector<16x128xf32>
    %26 = tpu.matmul %25, %12, %cst_19 {dimension_numbers = #tpu.dot_dimension_numbers<[1], [0], [0], [1], [0, 0, 1, 1], [], []>} : vector<16x8xf32>, vector<8x128xf32>, vector<16x128xf32> -> vector<16x128xf32>
    %27 = arith.addf %24, %26 : vector<16x128xf32>
    %28 = arith.truncf %27 : vector<16x128xf32> to vector<16x128xbf16>
    %c0_20 = arith.constant 0 : index
    %c0_21 = arith.constant 0 : index
    %29 = vector.load %arg10[%c0_20, %c0_21] : memref<16x128xbf16, #tpu.memory_space<vmem>>, vector<16x128xbf16>
    tpu.vector_store %arg10[%c0_20, %c0_21], %28 {strides = array<i32>} : memref<16x128xbf16, #tpu.memory_space<vmem>>, vector<16x128xbf16>,
    %c0_22 = arith.constant 0 : index
    %c0_23 = arith.constant 0 : index
    %30 = vector.load %arg12[%c0_22, %c0_23] : memref<16x1xf32, #tpu.memory_space<vmem>>, vector<16x1xf32>
    %cst_24 = arith.constant dense<0.000000e+00> : vector<16xf32>
    %31 = vector.multi_reduction <add>, %27, %cst_24 [1] : vector<16x128xf32> to vector<16xf32>
    %32 = vector.shape_cast %31 : vector<16xf32> to vector<16x1xf32>
    %33 = arith.addf %30, %32 : vector<16x1xf32>
    %c0_25 = arith.constant 0 : index
    %c0_26 = arith.constant 0 : index
    %34 = vector.load %arg12[%c0_25, %c0_26] : memref<16x1xf32, #tpu.memory_space<vmem>>, vector<16x1xf32>
    tpu.vector_store %arg12[%c0_25, %c0_26], %33 {strides = array<i32>} : memref<16x1xf32, #tpu.memory_space<vmem>>, vector<16x1xf32>,
    %c0_27 = arith.constant 0 : index
    %c0_28 = arith.constant 0 : index
    %35 = vector.load %arg13[%c0_27, %c0_28] : memref<16x1xf32, #tpu.memory_space<vmem>>, vector<16x1xf32>
    %36 = arith.mulf %27, %27 : vector<16x128xf32>
    %cst_29 = arith.constant dense<0.000000e+00> : vector<16xf32>
    %37 = vector.multi_reduction <add>, %36, %cst_29 [1] : vector<16x128xf32> to vector<16xf32>
    %38 = vector.shape_cast %37 : vector<16xf32> to vector<16x1xf32>
    %39 = arith.addf %35, %38 : vector<16x1xf32>
    %c0_30 = arith.constant 0 : index
    %c0_31 = arith.constant 0 : index
    %40 = vector.load %arg13[%c0_30, %c0_31] : memref<16x1xf32, #tpu.memory_space<vmem>>, vector<16x1xf32>
    tpu.vector_store %arg13[%c0_30, %c0_31], %39 {strides = array<i32>} : memref<16x1xf32, #tpu.memory_space<vmem>>, vector<16x1xf32>,
    %c0_i32_32 = arith.constant 0 : i32
    %41 = arith.cmpi eq, %arg1, %c0_i32_32 : i32
    %42 = arith.extui %41 : i1 to i32
    %c0_i32_33 = arith.constant 0 : i32
    %43 = arith.cmpi ne, %42, %c0_i32_33 : i32
    scf.if %43 {
      %c0_34 = arith.constant 0 : index
      %c0_35 = arith.constant 0 : index
      %44 = vector.load %arg12[%c0_34, %c0_35] : memref<16x1xf32, #tpu.memory_space<vmem>>, vector<16x1xf32>
      %c0_36 = arith.constant 0 : index
      %c0_37 = arith.constant 0 : index
      %45 = vector.load %arg13[%c0_36, %c0_37] : memref<16x1xf32, #tpu.memory_space<vmem>>, vector<16x1xf32>
      %46 = tpu.concatenate %44, %45 in 1 : vector<16x1xf32>, vector<16x1xf32> -> vector<16x2xf32>
      %c0_38 = arith.constant 0 : index
      %c0_39 = arith.constant 0 : index
      %c0_40 = arith.constant 0 : index
      %47 = vector.load %arg11[%c0_38, %c0_39, %c0_40] : memref<1x16x2xf32, #tpu.memory_space<vmem>>, vector<1x16x2xf32>
      %48 = vector.shape_cast %47 : vector<1x16x2xf32> to vector<16x2xf32>
      %49 = vector.shape_cast %46 : vector<16x2xf32> to vector<1x16x2xf32>
      tpu.vector_store %arg11[%c0_38, %c0_39, %c0_40], %49 {strides = array<i32>} : memref<1x16x2xf32, #tpu.memory_space<vmem>>, vector<1x16x2xf32>,
    } else {
    }
    return
  }
  func.func @transform_0(%arg0: i32, %arg1: i32) -> (i32, i32) {
    %c1_i32 = arith.constant 1 : i32
    %0 = arith.muli %arg0, %c1_i32 : i32
    %1 = arith.addi %0, %arg1 : i32
    %c0_i32 = arith.constant 0 : i32
    %c0_i32_0 = arith.constant 0 : i32
    return %c0_i32, %1 : i32, i32
  }
  func.func @transform_1(%arg0: i32, %arg1: i32) -> (i32, i32) {
    %c0_i32 = arith.constant 0 : i32
    %c0_i32_0 = arith.constant 0 : i32
    %c0_i32_1 = arith.constant 0 : i32
    return %c0_i32, %c0_i32_0 : i32, i32
  }
  func.func @transform_2(%arg0: i32, %arg1: i32) -> (i32, i32) {
    %c0_i32 = arith.constant 0 : i32
    %c0_i32_0 = arith.constant 0 : i32
    %c0_i32_1 = arith.constant 0 : i32
    return %c0_i32, %c0_i32_0 : i32, i32
  }
  func.func @transform_3(%arg0: i32, %arg1: i32) -> (i32, i32) {
    %c0_i32 = arith.constant 0 : i32
    %c0_i32_0 = arith.constant 0 : i32
    %c0_i32_1 = arith.constant 0 : i32
    return %c0_i32, %c0_i32_0 : i32, i32
  }
  func.func @transform_4(%arg0: i32, %arg1: i32) -> (i32, i32) {
    %c0_i32 = arith.constant 0 : i32
    %c0_i32_0 = arith.constant 0 : i32
    %c0_i32_1 = arith.constant 0 : i32
    return %c0_i32, %c0_i32_0 : i32, i32
  }
  func.func @transform_5(%arg0: i32, %arg1: i32) -> (i32, i32) {
    %c0_i32 = arith.constant 0 : i32
    %c0_i32_0 = arith.constant 0 : i32
    %c0_i32_1 = arith.constant 0 : i32
    return %c0_i32, %c0_i32_0 : i32, i32
  }
  func.func @transform_6(%arg0: i32, %arg1: i32) -> (i32, i32) {
    %c0_i32 = arith.constant 0 : i32
    %c0_i32_0 = arith.constant 0 : i32
    %c0_i32_1 = arith.constant 0 : i32
    return %c0_i32, %c0_i32_0 : i32, i32
  }
  func.func @transform_7(%arg0: i32, %arg1: i32) -> (i32, i32) {
    %c0_i32 = arith.constant 0 : i32
    %c0_i32_0 = arith.constant 0 : i32
    %c0_i32_1 = arith.constant 0 : i32
    return %c0_i32, %c0_i32_0 : i32, i32
  }
  func.func @transform_8(%arg0: i32, %arg1: i32) -> (i32, i32) {
    %c1_i32 = arith.constant 1 : i32
    %0 = arith.muli %arg0, %c1_i32 : i32
    %1 = arith.addi %0, %arg1 : i32
    %c0_i32 = arith.constant 0 : i32
    %c0_i32_0 = arith.constant 0 : i32
    return %c0_i32, %1 : i32, i32
  }
  func.func @transform_9(%arg0: i32, %arg1: i32) -> (i32, i32, i32) {
    %c0_i32 = arith.constant 0 : i32
    %c0_i32_0 = arith.constant 0 : i32
    %c0_i32_1 = arith.constant 0 : i32
    return %arg0, %c0_i32, %c0_i32_0 : i32, i32, i32
  }
}

module attributes {stable_mosaic.version = 11 : i64} {
  func.func @kernel(%arg0: i32, %arg1: i32, %arg2: memref<8x128xbf16, #tpu.memory_space<vmem>>, %arg3: memref<8x1xf32, #tpu.memory_space<vmem>>, %arg4: memref<8x1xf32, #tpu.memory_space<vmem>>, %arg5: memref<16x8xf32, #tpu.memory_space<vmem>>, %arg6: memref<1x16x2xf32, #tpu.memory_space<vmem>>, %arg7: memref<16x1xf32, #tpu.memory_space<vmem>>, %arg8: memref<16x1xf32, #tpu.memory_space<vmem>>) attributes {dimension_semantics = [#tpu.dimension_semantics<parallel>, #tpu.dimension_semantics<arbitrary>], iteration_bounds = array<i64: 1, 1>, scalar_prefetch = 0 : i64, scratch_operands = 2 : i64, tpu.core_type = #tpu.core_type<tc>, window_params = [{transform_indices = @transform_0, window_bounds = array<i64: 8, 128>}, {pipeline_mode = #tpu.pipeline_mode<synchronous>, transform_indices = @transform_1, window_bounds = array<i64: 8, 1>}, {pipeline_mode = #tpu.pipeline_mode<synchronous>, transform_indices = @transform_2, window_bounds = array<i64: 8, 1>}, {pipeline_mode = #tpu.pipeline_mode<synchronous>, transform_indices = @transform_3, window_bounds = array<i64: 16, 8>}, {transform_indices = @transform_4, window_bounds = array<i64: 1, 16, 2>}]} {
    %c0_i32 = arith.constant 0 : i32
    %0 = arith.cmpi eq, %arg1, %c0_i32 : i32
    %1 = arith.extui %0 : i1 to i32
    %c0_i32_0 = arith.constant 0 : i32
    %2 = arith.cmpi ne, %1, %c0_i32_0 : i32
    scf.if %2 {
      %cst_21 = arith.constant 0.000000e+00 : f32
      %29 = vector.broadcast %cst_21 : f32 to vector<16x1xf32>
      %c0_22 = arith.constant 0 : index
      %c0_23 = arith.constant 0 : index
      %30 = vector.load %arg7[%c0_22, %c0_23] : memref<16x1xf32, #tpu.memory_space<vmem>>, vector<16x1xf32>
      tpu.vector_store %arg7[%c0_22, %c0_23], %29 {strides = array<i32>} : memref<16x1xf32, #tpu.memory_space<vmem>>, vector<16x1xf32>,
      %cst_24 = arith.constant 0.000000e+00 : f32
      %31 = vector.broadcast %cst_24 : f32 to vector<16x1xf32>
      %c0_25 = arith.constant 0 : index
      %c0_26 = arith.constant 0 : index
      %32 = vector.load %arg8[%c0_25, %c0_26] : memref<16x1xf32, #tpu.memory_space<vmem>>, vector<16x1xf32>
      tpu.vector_store %arg8[%c0_25, %c0_26], %31 {strides = array<i32>} : memref<16x1xf32, #tpu.memory_space<vmem>>, vector<16x1xf32>,
    } else {
    }
    %c0 = arith.constant 0 : index
    %c0_1 = arith.constant 0 : index
    %3 = vector.load %arg2[%c0, %c0_1] : memref<8x128xbf16, #tpu.memory_space<vmem>>, vector<8x128xbf16>
    %4 = arith.extf %3 : vector<8x128xbf16> to vector<8x128xf32>
    %c0_2 = arith.constant 0 : index
    %c0_3 = arith.constant 0 : index
    %5 = vector.load %arg3[%c0_2, %c0_3] : memref<8x1xf32, #tpu.memory_space<vmem>>, vector<8x1xf32>
    %6 = vector.broadcast %5 : vector<8x1xf32> to vector<8x128xf32>
    %7 = arith.mulf %4, %6 : vector<8x128xf32>
    %c0_4 = arith.constant 0 : index
    %c0_5 = arith.constant 0 : index
    %8 = vector.load %arg4[%c0_4, %c0_5] : memref<8x1xf32, #tpu.memory_space<vmem>>, vector<8x1xf32>
    %9 = vector.broadcast %8 : vector<8x1xf32> to vector<8x128xf32>
    %10 = arith.addf %7, %9 : vector<8x128xf32>
    %cst = arith.constant 0.000000e+00 : f32
    %11 = vector.broadcast %cst : f32 to vector<8x128xf32>
    %12 = arith.maximumf %10, %11 : vector<8x128xf32>
    %c0_6 = arith.constant 0 : index
    %c0_7 = arith.constant 0 : index
    %13 = vector.load %arg5[%c0_6, %c0_7] : memref<16x8xf32, #tpu.memory_space<vmem>>, vector<16x8xf32>
    %cst_8 = arith.constant dense<0.000000e+00> : vector<16x128xf32>
    %14 = tpu.matmul %13, %12, %cst_8 {dimension_numbers = #tpu.dot_dimension_numbers<[1], [0], [0], [1], [0, 0, 1, 1], [], []>} : vector<16x8xf32>, vector<8x128xf32>, vector<16x128xf32> -> vector<16x128xf32>
    %c0_9 = arith.constant 0 : index
    %c0_10 = arith.constant 0 : index
    %15 = vector.load %arg7[%c0_9, %c0_10] : memref<16x1xf32, #tpu.memory_space<vmem>>, vector<16x1xf32>
    %cst_11 = arith.constant dense<0.000000e+00> : vector<16xf32>
    %16 = vector.multi_reduction <add>, %14, %cst_11 [1] : vector<16x128xf32> to vector<16xf32>
    %17 = vector.shape_cast %16 : vector<16xf32> to vector<16x1xf32>
    %18 = arith.addf %15, %17 : vector<16x1xf32>
    %c0_12 = arith.constant 0 : index
    %c0_13 = arith.constant 0 : index
    %19 = vector.load %arg7[%c0_12, %c0_13] : memref<16x1xf32, #tpu.memory_space<vmem>>, vector<16x1xf32>
    tpu.vector_store %arg7[%c0_12, %c0_13], %18 {strides = array<i32>} : memref<16x1xf32, #tpu.memory_space<vmem>>, vector<16x1xf32>,
    %c0_14 = arith.constant 0 : index
    %c0_15 = arith.constant 0 : index
    %20 = vector.load %arg8[%c0_14, %c0_15] : memref<16x1xf32, #tpu.memory_space<vmem>>, vector<16x1xf32>
    %21 = arith.mulf %14, %14 : vector<16x128xf32>
    %cst_16 = arith.constant dense<0.000000e+00> : vector<16xf32>
    %22 = vector.multi_reduction <add>, %21, %cst_16 [1] : vector<16x128xf32> to vector<16xf32>
    %23 = vector.shape_cast %22 : vector<16xf32> to vector<16x1xf32>
    %24 = arith.addf %20, %23 : vector<16x1xf32>
    %c0_17 = arith.constant 0 : index
    %c0_18 = arith.constant 0 : index
    %25 = vector.load %arg8[%c0_17, %c0_18] : memref<16x1xf32, #tpu.memory_space<vmem>>, vector<16x1xf32>
    tpu.vector_store %arg8[%c0_17, %c0_18], %24 {strides = array<i32>} : memref<16x1xf32, #tpu.memory_space<vmem>>, vector<16x1xf32>,
    %c0_i32_19 = arith.constant 0 : i32
    %26 = arith.cmpi eq, %arg1, %c0_i32_19 : i32
    %27 = arith.extui %26 : i1 to i32
    %c0_i32_20 = arith.constant 0 : i32
    %28 = arith.cmpi ne, %27, %c0_i32_20 : i32
    scf.if %28 {
      %c0_21 = arith.constant 0 : index
      %c0_22 = arith.constant 0 : index
      %29 = vector.load %arg7[%c0_21, %c0_22] : memref<16x1xf32, #tpu.memory_space<vmem>>, vector<16x1xf32>
      %c0_23 = arith.constant 0 : index
      %c0_24 = arith.constant 0 : index
      %30 = vector.load %arg8[%c0_23, %c0_24] : memref<16x1xf32, #tpu.memory_space<vmem>>, vector<16x1xf32>
      %31 = tpu.concatenate %29, %30 in 1 : vector<16x1xf32>, vector<16x1xf32> -> vector<16x2xf32>
      %c0_25 = arith.constant 0 : index
      %c0_26 = arith.constant 0 : index
      %c0_27 = arith.constant 0 : index
      %32 = vector.load %arg6[%c0_25, %c0_26, %c0_27] : memref<1x16x2xf32, #tpu.memory_space<vmem>>, vector<1x16x2xf32>
      %33 = vector.shape_cast %32 : vector<1x16x2xf32> to vector<16x2xf32>
      %34 = vector.shape_cast %31 : vector<16x2xf32> to vector<1x16x2xf32>
      tpu.vector_store %arg6[%c0_25, %c0_26, %c0_27], %34 {strides = array<i32>} : memref<1x16x2xf32, #tpu.memory_space<vmem>>, vector<1x16x2xf32>,
    } else {
    }
    return
  }
  func.func @transform_0(%arg0: i32, %arg1: i32) -> (i32, i32) {
    %c1_i32 = arith.constant 1 : i32
    %0 = arith.muli %arg0, %c1_i32 : i32
    %1 = arith.addi %0, %arg1 : i32
    %c0_i32 = arith.constant 0 : i32
    %c0_i32_0 = arith.constant 0 : i32
    return %c0_i32, %1 : i32, i32
  }
  func.func @transform_1(%arg0: i32, %arg1: i32) -> (i32, i32) {
    %c0_i32 = arith.constant 0 : i32
    %c0_i32_0 = arith.constant 0 : i32
    %c0_i32_1 = arith.constant 0 : i32
    return %c0_i32, %c0_i32_0 : i32, i32
  }
  func.func @transform_2(%arg0: i32, %arg1: i32) -> (i32, i32) {
    %c0_i32 = arith.constant 0 : i32
    %c0_i32_0 = arith.constant 0 : i32
    %c0_i32_1 = arith.constant 0 : i32
    return %c0_i32, %c0_i32_0 : i32, i32
  }
  func.func @transform_3(%arg0: i32, %arg1: i32) -> (i32, i32) {
    %c0_i32 = arith.constant 0 : i32
    %c0_i32_0 = arith.constant 0 : i32
    %c0_i32_1 = arith.constant 0 : i32
    return %c0_i32, %c0_i32_0 : i32, i32
  }
  func.func @transform_4(%arg0: i32, %arg1: i32) -> (i32, i32, i32) {
    %c0_i32 = arith.constant 0 : i32
    %c0_i32_0 = arith.constant 0 : i32
    %c0_i32_1 = arith.constant 0 : i32
    return %arg0, %c0_i32, %c0_i32_0 : i32, i32, i32
  }
}

</mosaic_0001>

<llo_original>
// kernel: wide_resnet_forward.5
$region0: #{wide_resnet_forward.5}
  #allocation0 [shape = 'u32[]', space=smem, size = 0x4, offset = 0x4, fixed_abs, tag = 'smem constant byte address 0x4 - core index']
  #allocation1 [shape = 'u32[144,128]{1,0:T(1,128)}', space=vmem, size = 0x12000, scoped, tag = 'internal scratch']
  #allocation2 [shape = 'f32[8,1]{1,0:T(8,128)}', space=vmem, size = 0x1000, scoped, tag = 'scratch operand']
  #allocation3 [shape = 'f32[8,1]{1,0:T(8,128)}', space=vmem, size = 0x1000, scoped, tag = 'scratch operand']
  %s0 = inlined_call_operand.vmem [shape: f32[4,512], index: 0, kind: input, shape index: {}]
  %s1 = inlined_call_operand.vmem [shape: f32[8,4], index: 1, kind: input, shape index: {}]
  %s2 = inlined_call_operand.vmem [shape: bf16[8,512], index: 2, kind: output, shape index: {0}]
  %s3 = inlined_call_operand.vmem [shape: f32[1,8,2], index: 3, kind: output, shape index: {1}]
  %4 = xla_tuple %s2, %s3
  %s5 = sld [smem:[#allocation0]]
  $region34: #{wide_resnet_forward.5} parent=0
    _
  %s7 = ssub.s32 1, %s5
  %s8 = scalar_select 0, %s7, %s5
  // Predicated region
  $region2: #{wide_resnet_forward.5} parent=0 // pred_check
    _
  $region3: #{wide_resnet_forward.5} parent=0 // pred_check_branch
    %10 = sbr.rel (0) target = $region5
  $region4: #{wide_resnet_forward.5} parent=0 // pred_region
    %s11 = sadd.s32 0, 0
    %s12 = smul.u32 4, %s11
    %p13 = scmp.lt.s32.totalorder %s12, 3
    %s14 = scalar_select %p13, %s12, 3
    %s15 = smul.addr %s14, 4
    %s16 = scalar_lea.vmem %s0, %s15
    %s17 = sadd.s32 0, 0
    %s18 = smul.u32 4, %s17
  $region5: #{wide_resnet_forward.5} parent=0 // pred_fallthru
    _
  // Predicated region
  $region6: #{wide_resnet_forward.5} parent=0 // pred_check
    _
  $region7: #{wide_resnet_forward.5} parent=0 // pred_check_branch
    %20 = sbr.rel (0) target = $region9
  $region8: #{wide_resnet_forward.5} parent=0 // pred_region
    _
  $region9: #{wide_resnet_forward.5} parent=0 // pred_fallthru
    _
  %s21 = sadd.s32 0, 0
  %s22 = smul.u32 4, %s21
  %p23 = scmp.lt.s32.totalorder %s22, 3
  %s24 = scalar_select %p23, %s22, 3
  %s25 = smul.addr %s24, 4
  %s26 = scalar_lea.vmem %s0, %s25
  %s27 = sadd.s32 0, 0
  %s28 = smul.u32 4, %s27
  %p29 = scmp.lt.s32.totalorder %s28, 3
  %s30 = scalar_select %p29, %s28, 3
  %s31 = smul.addr %s30, 4
  %s32 = scalar_lea.vmem %s2, %s31
  %s33 = sadd.s32 0, 0
  %s34 = smul.u32 4, %s33
  %p35 = scmp.lt.s32.totalorder %s34, 3
  %s36 = scalar_select %p35, %s34, 3
  %s37 = smul.addr %s36, 4
  %s38 = scalar_lea.vmem %s0, %s37
  %s39 = sadd.s32 0, 0
  %s40 = smul.u32 4, %s39
  %s41 = sadd.s32 0, 0
  %s42 = smul.u32 4, %s41
  %p43 = scmp.lt.s32.totalorder %s42, 3
  %s44 = scalar_select %p43, %s42, 3
  %s45 = smul.addr %s44, 4
  %s46 = scalar_lea.vmem %s2, %s45
  %s47 = sadd.s32 0, 0
  %s48 = smul.u32 4, %s47
  %p49 = scmp.eq.s32.totalorder 0, 0
  // Predicated region
  $region10: #{wide_resnet_forward.5} parent=0 // pred_check
    %p50 = pneg %p49
  $region11: #{wide_resnet_forward.5} parent=0 // pred_check_branch
    %52 = sbr.rel (%p50) target = $region13
  $region12: #{wide_resnet_forward.5} parent=0 // pred_region
    %vm53 = vcmask 7168
    %54 = vst.msk [vmem:[#allocation2] sm:$0xff] %vm53, 0.0
    %55 = vst.msk [vmem:[#allocation3] sm:$0xff] %vm53, 0.0
  $region13: #{wide_resnet_forward.5} parent=0 // pred_fallthru
    _
  %v56 = vld [vmem:[%s38] sm:$0xff]
  %v57 = vld [vmem:[%s38 + $0x8] sm:$0xff]
  %v58 = vld [vmem:[%s1] sm:$0xff]
  %v61 = vcombine.high %v56, %v56
  %v62 = vcombine.high %v57, %v57
  %vm63 = vcmask 31744
  %v65 = vsel %vm63, %v58, 0
  %vm67 = vcmask 1043456
  %v68 = vsel %vm67, %v56, 0
  %v70 = vsel %vm67, %v61, 0
  %v72 = vsel %vm67, %v57, 0
  %v74 = vsel %vm67, %v62, 0
  %76 = vmatprep.subr.mxu0 0.0
  %77 = vmatpush1.msra.mxu0 0.0
  %78 = vmatprep.subr.mxu0 0.0
  %79 = vmatpush1.msra.mxu0 0.0
  %80 = vmatprep.subr.mxu0 0.0
  %81 = vmatpush1.msra.mxu0 0.0
  %82 = vmatprep.subr.mxu0 0.0
  %83 = vmatpush1.msra.mxu0 0.0
  %84 = vmatprep.subr.mxu0 0.0
  %85 = vmatpush1.msra.mxu0 0.0
  %86 = vmatprep.subr.mxu0 0.0
  %87 = vmatpush1.msra.mxu0 0.0
  %88 = vmatprep.subr.mxu0 0.0
  %89 = vmatpush1.msra.mxu0 0.0
  %90 = vmatprep.subr.mxu0 0.0
  %91 = vmatpush1.msra.mxu0 0.0
  %92 = vmatprep.subr.mxu0 0.0
  %93 = vmatpush1.msra.mxu0 0.0
  %94 = vmatprep.subr.mxu0 0.0
  %95 = vmatpush1.msra.mxu0 0.0
  %96 = vmatprep.subr.mxu0 0.0
  %97 = vmatpush1.msra.mxu0 0.0
  %98 = vmatprep.subr.mxu0 0.0
  %99 = vmatpush1.msra.mxu0 0.0
  %100 = vmatprep.subr.mxu0 0.0
  %101 = vmatpush1.msra.mxu0 0.0
  %102 = vmatprep.subr.mxu0 0.0
  %103 = vmatpush1.msra.mxu0 0.0
  %104 = vmatprep.subr.mxu0 0.0
  %105 = vmatpush1.msra.mxu0 0.0
  %106 = vmatprep.subr.mxu0 %v70
  %107 = vmatpush1.msra.mxu0 %v68
  %108 = vmatprep.subr.mxu0 0.0
  %109 = vmatpush2.msra.mxu0 0.0
  %110 = vmatprep.subr.mxu0 0.0
  %111 = vmatpush2.msra.mxu0 0.0
  %112 = vmatprep.subr.mxu0 0.0
  %113 = vmatpush2.msra.mxu0 0.0
  %114 = vmatprep.subr.mxu0 0.0
  %115 = vmatpush2.msra.mxu0 0.0
  %116 = vmatprep.subr.mxu0 0.0
  %117 = vmatpush2.msra.mxu0 0.0
  %118 = vmatprep.subr.mxu0 0.0
  %119 = vmatpush2.msra.mxu0 0.0
  %120 = vmatprep.subr.mxu0 0.0
  %121 = vmatpush2.msra.mxu0 0.0
  %122 = vmatprep.subr.mxu0 0.0
  %123 = vmatpush2.msra.mxu0 0.0
  %124 = vmatprep.subr.mxu0 0.0
  %125 = vmatpush2.msra.mxu0 0.0
  %126 = vmatprep.subr.mxu0 0.0
  %127 = vmatpush2.msra.mxu0 0.0
  %128 = vmatprep.subr.mxu0 0.0
  %129 = vmatpush2.msra.mxu0 0.0
  %130 = vmatprep.subr.mxu0 0.0
  %131 = vmatpush2.msra.mxu0 0.0
  %132 = vmatprep.subr.mxu0 0.0
  %133 = vmatpush2.msra.mxu0 0.0
  %134 = vmatprep.subr.mxu0 0.0
  %135 = vmatpush2.msra.mxu0 0.0
  %136 = vmatprep.subr.mxu0 0.0
  %137 = vmatpush2.msra.mxu0 0.0
  %138 = vmatprep.subr.mxu0 0.0
  %139 = vmatpush2.msra.mxu0 0.0
  %140 = vmatprep.mubr.f32.mxu0 0.0
  %141 = vmatmul.mubr.f32.gmra.mxu0 %v65
  %v142 = vpop.f32.mrf.mxu0
  %v143 = vadd.f32 0.0, %v142
  %v144 = vpop.f32.mrf.mxu0
  %v145 = vadd.f32 0.0, %v144
  %146 = vdwg.mxu0
  %147 = vmatprep.subr.mxu0 0.0
  %148 = vmatpush1.msra.mxu0 0.0
  %149 = vmatprep.subr.mxu0 0.0
  %150 = vmatpush1.msra.mxu0 0.0
  %151 = vmatprep.subr.mxu0 0.0
  %152 = vmatpush1.msra.mxu0 0.0
  %153 = vmatprep.subr.mxu0 0.0
  %154 = vmatpush1.msra.mxu0 0.0
  %155 = vmatprep.subr.mxu0 0.0
  %156 = vmatpush1.msra.mxu0 0.0
  %157 = vmatprep.subr.mxu0 0.0
  %158 = vmatpush1.msra.mxu0 0.0
  %159 = vmatprep.subr.mxu0 0.0
  %160 = vmatpush1.msra.mxu0 0.0
  %161 = vmatprep.subr.mxu0 0.0
  %162 = vmatpush1.msra.mxu0 0.0
  %163 = vmatprep.subr.mxu0 0.0
  %164 = vmatpush1.msra.mxu0 0.0
  %165 = vmatprep.subr.mxu0 0.0
  %166 = vmatpush1.msra.mxu0 0.0
  %167 = vmatprep.subr.mxu0 0.0
  %168 = vmatpush1.msra.mxu0 0.0
  %169 = vmatprep.subr.mxu0 0.0
  %170 = vmatpush1.msra.mxu0 0.0
  %171 = vmatprep.subr.mxu0 0.0
  %172 = vmatpush1.msra.mxu0 0.0
  %173 = vmatprep.subr.mxu0 0.0
  %174 = vmatpush1.msra.mxu0 0.0
  %175 = vmatprep.subr.mxu0 0.0
  %176 = vmatpush1.msra.mxu0 0.0
  %177 = vmatprep.subr.mxu0 %v74
  %178 = vmatpush1.msra.mxu0 %v72
  %179 = vmatprep.subr.mxu0 0.0
  %180 = vmatpush2.msra.mxu0 0.0
  %181 = vmatprep.subr.mxu0 0.0
  %182 = vmatpush2.msra.mxu0 0.0
  %183 = vmatprep.subr.mxu0 0.0
  %184 = vmatpush2.msra.mxu0 0.0
  %185 = vmatprep.subr.mxu0 0.0
  %186 = vmatpush2.msra.mxu0 0.0
  %187 = vmatprep.subr.mxu0 0.0
  %188 = vmatpush2.msra.mxu0 0.0
  %189 = vmatprep.subr.mxu0 0.0
  %190 = vmatpush2.msra.mxu0 0.0
  %191 = vmatprep.subr.mxu0 0.0
  %192 = vmatpush2.msra.mxu0 0.0
  %193 = vmatprep.subr.mxu0 0.0
  %194 = vmatpush2.msra.mxu0 0.0
  %195 = vmatprep.subr.mxu0 0.0
  %196 = vmatpush2.msra.mxu0 0.0
  %197 = vmatprep.subr.mxu0 0.0
  %198 = vmatpush2.msra.mxu0 0.0
  %199 = vmatprep.subr.mxu0 0.0
  %200 = vmatpush2.msra.mxu0 0.0
  %201 = vmatprep.subr.mxu0 0.0
  %202 = vmatpush2.msra.mxu0 0.0
  %203 = vmatprep.subr.mxu0 0.0
  %204 = vmatpush2.msra.mxu0 0.0
  %205 = vmatprep.subr.mxu0 0.0
  %206 = vmatpush2.msra.mxu0 0.0
  %207 = vmatprep.subr.mxu0 0.0
  %208 = vmatpush2.msra.mxu0 0.0
  %209 = vmatprep.subr.mxu0 0.0
  %210 = vmatpush2.msra.mxu0 0.0
  %211 = vmatprep.mubr.f32.mxu0 0.0
  %212 = vmatmul.mubr.f32.gmra.mxu0 %v65
  %v213 = vpop.f32.mrf.mxu0
  %v214 = vadd.f32 0.0, %v213
  %v215 = vpop.f32.mrf.mxu0
  %v216 = vadd.f32 0.0, %v215
  %217 = vdwg.mxu0
  %v218 = vpack.c.bf16 %v143, %v143
  %v219 = vpack.c.bf16 %v145, %v145
  %v220 = vpack.c.bf16 %v214, %v214
  %v221 = vpack.c.bf16 %v216, %v216
  %v226 = vunpack.c.l.b16 %v218
  %v227 = vunpack.c.l.b16 %v219
  %v228 = vunpack.c.l.b16 %v220
  %v229 = vunpack.c.l.b16 %v221
  %v230 = vpack.c.b16 %v227, %v226
  %v231 = vpack.c.b16 %v229, %v228
  %234 = vst [vmem:[%s46] sm:$0xff] %v230
  %235 = vst [vmem:[%s46 + $0x8] sm:$0xff] %v231
  %v236 = vld [vmem:[#allocation2] sm:$0xff]
  %v237 = vadd.f32 %v143, %v145
  %v238 = vadd.f32 %v237, %v214
  %v239 = vadd.f32 %v238, %v216
  %240 = vadd.xlane.f32.xlu0 %v239
  %v241 = vpop.xlane.xlu0 %240
  %v242 = vadd.f32 %v236, %v241
  %vm243 = vcmask 7168
  %244 = vst.msk [vmem:[#allocation2] sm:$0xff] %vm243, %v242
  %v245 = vld [vmem:[#allocation3] sm:$0xff]
  %v246 = vmul.f32 %v143, %v143
  %v247 = vmul.f32 %v145, %v145
  %v248 = vmul.f32 %v214, %v214
  %v249 = vmul.f32 %v216, %v216
  %v250 = vadd.f32 %v246, %v247
  %v251 = vadd.f32 %v250, %v248
  %v252 = vadd.f32 %v251, %v249
  %253 = vadd.xlane.f32.xlu0 %v252
  %v254 = vpop.xlane.xlu0 %253
  %v255 = vadd.f32 %v245, %v254
  %256 = vst.msk [vmem:[#allocation3] sm:$0xff] %vm243, %v255
  // Predicated region
  $region14: #{wide_resnet_forward.5} parent=0 // pred_check
    %p257 = pneg %p49
  $region15: #{wide_resnet_forward.5} parent=0 // pred_check_branch
    %259 = sbr.rel (%p257) target = $region17
  $region16: #{wide_resnet_forward.5} parent=0 // pred_region
    %v260 = vld [vmem:[#allocation2] sm:$0xff]
    %v261 = vld [vmem:[#allocation3] sm:$0xff]
    %263 = vrot.lane.b32.xlu0 %v261, 1
    %v264 = vpop.permute.xlu0 %263
    %v266 = vsel %vm243, %v260, %v264
    %vm267 = vcmask 15360
    %268 = vst.msk [vmem:[%s3] sm:$0xff] %vm267, %v266
  $region17: #{wide_resnet_forward.5} parent=0 // pred_fallthru
    _
  %s269 = sadd.s32 0, 0
  %s270 = smul.u32 4, %s269
  %p271 = scmp.lt.s32.totalorder %s270, 3
  %s272 = scalar_select %p271, %s270, 3
  %s273 = smul.addr %s272, 4
  %s274 = scalar_lea.vmem %s2, %s273
  // Predicated region
  $region18: #{wide_resnet_forward.5} parent=0 // pred_check
    _
  $region19: #{wide_resnet_forward.5} parent=0 // pred_check_branch
    %276 = sbr.rel (0) target = $region21
  $region20: #{wide_resnet_forward.5} parent=0 // pred_region
    %s277 = sadd.s32 0, 0
    %s278 = smul.u32 4, %s277
  $region21: #{wide_resnet_forward.5} parent=0 // pred_fallthru
    _
  // Predicated region
  $region22: #{wide_resnet_forward.5} parent=0 // pred_check
    _
  $region23: #{wide_resnet_forward.5} parent=0 // pred_check_branch
    %280 = sbr.rel (0) target = $region25
  $region24: #{wide_resnet_forward.5} parent=0 // pred_region
    _
  $region25: #{wide_resnet_forward.5} parent=0 // pred_fallthru
    _
  // Predicated region
  $region26: #{wide_resnet_forward.5} parent=0 // pred_check
    _
  $region27: #{wide_resnet_forward.5} parent=0 // pred_check_branch
    %282 = sbr.rel (0) target = $region29
  $region28: #{wide_resnet_forward.5} parent=0 // pred_region
    %s283 = sadd.s32 0, 0
    %s284 = smul.u32 4, %s283
    %p285 = scmp.lt.s32.totalorder %s284, 3
    %s286 = scalar_select %p285, %s284, 3
    %s287 = smul.addr %s286, 4
    %s288 = scalar_lea.vmem %s2, %s287
  $region29: #{wide_resnet_forward.5} parent=0 // pred_fallthru
    _
  // Predicated region
  $region30: #{wide_resnet_forward.5} parent=0 // pred_check
    _
  $region31: #{wide_resnet_forward.5} parent=0 // pred_check_branch
    %290 = sbr.rel (0) target = $region33
  $region32: #{wide_resnet_forward.5} parent=0 // pred_region
    _
  $region33: #{wide_resnet_forward.5} parent=0 // pred_fallthru
    _

// kernel: wide_resnet_forward.6
$region0: #{wide_resnet_forward.6}
  #allocation0 [shape = 'u32[]', space=smem, size = 0x4, offset = 0x4, fixed_abs, tag = 'smem constant byte address 0x4 - core index']
  #allocation1 [shape = 'u32[144,128]{1,0:T(1,128)}', space=vmem, size = 0x12000, scoped, tag = 'internal scratch']
  #allocation2 [shape = 'f32[8,1]{1,0:T(8,128)}', space=vmem, size = 0x1000, scoped, tag = 'scratch operand']
  #allocation3 [shape = 'f32[8,1]{1,0:T(8,128)}', space=vmem, size = 0x1000, scoped, tag = 'scratch operand']
  %s0 = inlined_call_operand.vmem [shape: bf16[8,512], index: 0, kind: input, shape index: {}]
  %s1 = inlined_call_operand.vmem [shape: f32[8,1], index: 1, kind: input, shape index: {}]
  %s2 = inlined_call_operand.vmem [shape: f32[8,1], index: 2, kind: input, shape index: {}]
  %s3 = inlined_call_operand.vmem [shape: f32[8,8], index: 3, kind: input, shape index: {}]
  %s4 = inlined_call_operand.vmem [shape: f32[1,8,2], index: 4, kind: output, shape index: {}]
  %s5 = sld [smem:[#allocation0]]
  $region34: #{wide_resnet_forward.6} parent=0
    _
  %s7 = ssub.s32 1, %s5
  %s8 = scalar_select 0, %s7, %s5
  // Predicated region
  $region2: #{wide_resnet_forward.6} parent=0 // pred_check
    _
  $region3: #{wide_resnet_forward.6} parent=0 // pred_check_branch
    %10 = sbr.rel (0) target = $region5
  $region4: #{wide_resnet_forward.6} parent=0 // pred_region
    %s11 = sadd.s32 0, 0
    %s12 = smul.u32 4, %s11
    %p13 = scmp.lt.s32.totalorder %s12, 3
    %s14 = scalar_select %p13, %s12, 3
    %s15 = smul.addr %s14, 4
    %s16 = scalar_lea.vmem %s0, %s15
    %s17 = sadd.s32 0, 0
    %s18 = smul.u32 4, %s17
  $region5: #{wide_resnet_forward.6} parent=0 // pred_fallthru
    _
  // Predicated region
  $region6: #{wide_resnet_forward.6} parent=0 // pred_check
    _
  $region7: #{wide_resnet_forward.6} parent=0 // pred_check_branch
    %20 = sbr.rel (0) target = $region9
  $region8: #{wide_resnet_forward.6} parent=0 // pred_region
    _
  $region9: #{wide_resnet_forward.6} parent=0 // pred_fallthru
    _
  // Predicated region
  $region10: #{wide_resnet_forward.6} parent=0 // pred_check
    _
  $region11: #{wide_resnet_forward.6} parent=0 // pred_check_branch
    %22 = sbr.rel (0) target = $region13
  $region12: #{wide_resnet_forward.6} parent=0 // pred_region
    _
  $region13: #{wide_resnet_forward.6} parent=0 // pred_fallthru
    _
  // Predicated region
  $region14: #{wide_resnet_forward.6} parent=0 // pred_check
    _
  $region15: #{wide_resnet_forward.6} parent=0 // pred_check_branch
    %24 = sbr.rel (0) target = $region17
  $region16: #{wide_resnet_forward.6} parent=0 // pred_region
    _
  $region17: #{wide_resnet_forward.6} parent=0 // pred_fallthru
    _
  %s25 = sadd.s32 0, 0
  %s26 = smul.u32 4, %s25
  %p27 = scmp.lt.s32.totalorder %s26, 3
  %s28 = scalar_select %p27, %s26, 3
  %s29 = smul.addr %s28, 4
  %s30 = scalar_lea.vmem %s0, %s29
  %s31 = sadd.s32 0, 0
  %s32 = smul.u32 4, %s31
  %p33 = scmp.lt.s32.totalorder %s32, 3
  %s34 = scalar_select %p33, %s32, 3
  %s35 = smul.addr %s34, 4
  %s36 = scalar_lea.vmem %s0, %s35
  %s37 = sadd.s32 0, 0
  %s38 = smul.u32 4, %s37
  %p39 = scmp.eq.s32.totalorder 0, 0
  // Predicated region
  $region18: #{wide_resnet_forward.6} parent=0 // pred_check
    %p40 = pneg %p39
  $region19: #{wide_resnet_forward.6} parent=0 // pred_check_branch
    %42 = sbr.rel (%p40) target = $region21
  $region20: #{wide_resnet_forward.6} parent=0 // pred_region
    %vm43 = vcmask 7168
    %44 = vst.msk [vmem:[#allocation2] sm:$0xff] %vm43, 0.0
    %45 = vst.msk [vmem:[#allocation3] sm:$0xff] %vm43, 0.0
  $region21: #{wide_resnet_forward.6} parent=0 // pred_fallthru
    _
  %v46 = vld [vmem:[%s36] sm:$0xff]
  %v47 = vld [vmem:[%s36 + $0x8] sm:$0xff]
  %v48 = vunpack.c.l.bf16 %v46
  %v49 = vunpack.c.h.bf16 %v46
  %v50 = vunpack.c.l.bf16 %v47
  %v51 = vunpack.c.h.bf16 %v47
  %v52 = vld [vmem:[%s1] sm:$0xff]
  %54 = vset.pattern.permute.xlu0 0
  %55 = vperm.xlu0 %54, %v52
  %v56 = vpop.permute.xlu0 %55
  %v58 = vmul.f32 %v48, %v56
  %v59 = vmul.f32 %v49, %v56
  %v60 = vmul.f32 %v50, %v56
  %v61 = vmul.f32 %v51, %v56
  %v62 = vld [vmem:[%s2] sm:$0xff]
  %64 = vset.pattern.permute.xlu0 0
  %65 = vperm.xlu0 %64, %v62
  %v66 = vpop.permute.xlu0 %65
  %v68 = vadd.f32 %v58, %v66
  %v69 = vadd.f32 %v59, %v66
  %v70 = vadd.f32 %v60, %v66
  %v71 = vadd.f32 %v61, %v66
  %v72 = vmax.f32 %v68, 0.0
  %v73 = vmax.f32 %v69, 0.0
  %v74 = vmax.f32 %v70, 0.0
  %v75 = vmax.f32 %v71, 0.0
  %v76 = vld [vmem:[%s3] sm:$0xff]
  %vm77 = vcmask 64512
  %v79 = vsel %vm77, %v76, 0
  %81 = vmatprep.subr.mxu0 0.0
  %82 = vmatpush1.msra.mxu0 0.0
  %83 = vmatprep.subr.mxu0 0.0
  %84 = vmatpush1.msra.mxu0 0.0
  %85 = vmatprep.subr.mxu0 0.0
  %86 = vmatpush1.msra.mxu0 0.0
  %87 = vmatprep.subr.mxu0 0.0
  %88 = vmatpush1.msra.mxu0 0.0
  %89 = vmatprep.subr.mxu0 0.0
  %90 = vmatpush1.msra.mxu0 0.0
  %91 = vmatprep.subr.mxu0 0.0
  %92 = vmatpush1.msra.mxu0 0.0
  %93 = vmatprep.subr.mxu0 0.0
  %94 = vmatpush1.msra.mxu0 0.0
  %95 = vmatprep.subr.mxu0 0.0
  %96 = vmatpush1.msra.mxu0 0.0
  %97 = vmatprep.subr.mxu0 0.0
  %98 = vmatpush1.msra.mxu0 0.0
  %99 = vmatprep.subr.mxu0 0.0
  %100 = vmatpush1.msra.mxu0 0.0
  %101 = vmatprep.subr.mxu0 0.0
  %102 = vmatpush1.msra.mxu0 0.0
  %103 = vmatprep.subr.mxu0 0.0
  %104 = vmatpush1.msra.mxu0 0.0
  %105 = vmatprep.subr.mxu0 0.0
  %106 = vmatpush1.msra.mxu0 0.0
  %107 = vmatprep.subr.mxu0 0.0
  %108 = vmatpush1.msra.mxu0 0.0
  %109 = vmatprep.subr.mxu0 0.0
  %110 = vmatpush1.msra.mxu0 0.0
  %111 = vmatprep.subr.mxu0 %v73
  %112 = vmatpush1.msra.mxu0 %v72
  %113 = vmatprep.subr.mxu0 0.0
  %114 = vmatpush2.msra.mxu0 0.0
  %115 = vmatprep.subr.mxu0 0.0
  %116 = vmatpush2.msra.mxu0 0.0
  %117 = vmatprep.subr.mxu0 0.0
  %118 = vmatpush2.msra.mxu0 0.0
  %119 = vmatprep.subr.mxu0 0.0
  %120 = vmatpush2.msra.mxu0 0.0
  %121 = vmatprep.subr.mxu0 0.0
  %122 = vmatpush2.msra.mxu0 0.0
  %123 = vmatprep.subr.mxu0 0.0
  %124 = vmatpush2.msra.mxu0 0.0
  %125 = vmatprep.subr.mxu0 0.0
  %126 = vmatpush2.msra.mxu0 0.0
  %127 = vmatprep.subr.mxu0 0.0
  %128 = vmatpush2.msra.mxu0 0.0
  %129 = vmatprep.subr.mxu0 0.0
  %130 = vmatpush2.msra.mxu0 0.0
  %131 = vmatprep.subr.mxu0 0.0
  %132 = vmatpush2.msra.mxu0 0.0
  %133 = vmatprep.subr.mxu0 0.0
  %134 = vmatpush2.msra.mxu0 0.0
  %135 = vmatprep.subr.mxu0 0.0
  %136 = vmatpush2.msra.mxu0 0.0
  %137 = vmatprep.subr.mxu0 0.0
  %138 = vmatpush2.msra.mxu0 0.0
  %139 = vmatprep.subr.mxu0 0.0
  %140 = vmatpush2.msra.mxu0 0.0
  %141 = vmatprep.subr.mxu0 0.0
  %142 = vmatpush2.msra.mxu0 0.0
  %143 = vmatprep.subr.mxu0 0.0
  %144 = vmatpush2.msra.mxu0 0.0
  %145 = vmatprep.mubr.f32.mxu0 0.0
  %146 = vmatmul.mubr.f32.gmra.mxu0 %v79
  %v147 = vpop.f32.mrf.mxu0
  %v148 = vadd.f32 0.0, %v147
  %v149 = vpop.f32.mrf.mxu0
  %v150 = vadd.f32 0.0, %v149
  %151 = vdwg.mxu0
  %152 = vmatprep.subr.mxu0 0.0
  %153 = vmatpush1.msra.mxu0 0.0
  %154 = vmatprep.subr.mxu0 0.0
  %155 = vmatpush1.msra.mxu0 0.0
  %156 = vmatprep.subr.mxu0 0.0
  %157 = vmatpush1.msra.mxu0 0.0
  %158 = vmatprep.subr.mxu0 0.0
  %159 = vmatpush1.msra.mxu0 0.0
  %160 = vmatprep.subr.mxu0 0.0
  %161 = vmatpush1.msra.mxu0 0.0
  %162 = vmatprep.subr.mxu0 0.0
  %163 = vmatpush1.msra.mxu0 0.0
  %164 = vmatprep.subr.mxu0 0.0
  %165 = vmatpush1.msra.mxu0 0.0
  %166 = vmatprep.subr.mxu0 0.0
  %167 = vmatpush1.msra.mxu0 0.0
  %168 = vmatprep.subr.mxu0 0.0
  %169 = vmatpush1.msra.mxu0 0.0
  %170 = vmatprep.subr.mxu0 0.0
  %171 = vmatpush1.msra.mxu0 0.0
  %172 = vmatprep.subr.mxu0 0.0
  %173 = vmatpush1.msra.mxu0 0.0
  %174 = vmatprep.subr.mxu0 0.0
  %175 = vmatpush1.msra.mxu0 0.0
  %176 = vmatprep.subr.mxu0 0.0
  %177 = vmatpush1.msra.mxu0 0.0
  %178 = vmatprep.subr.mxu0 0.0
  %179 = vmatpush1.msra.mxu0 0.0
  %180 = vmatprep.subr.mxu0 0.0
  %181 = vmatpush1.msra.mxu0 0.0
  %182 = vmatprep.subr.mxu0 %v75
  %183 = vmatpush1.msra.mxu0 %v74
  %184 = vmatprep.subr.mxu0 0.0
  %185 = vmatpush2.msra.mxu0 0.0
  %186 = vmatprep.subr.mxu0 0.0
  %187 = vmatpush2.msra.mxu0 0.0
  %188 = vmatprep.subr.mxu0 0.0
  %189 = vmatpush2.msra.mxu0 0.0
  %190 = vmatprep.subr.mxu0 0.0
  %191 = vmatpush2.msra.mxu0 0.0
  %192 = vmatprep.subr.mxu0 0.0
  %193 = vmatpush2.msra.mxu0 0.0
  %194 = vmatprep.subr.mxu0 0.0
  %195 = vmatpush2.msra.mxu0 0.0
  %196 = vmatprep.subr.mxu0 0.0
  %197 = vmatpush2.msra.mxu0 0.0
  %198 = vmatprep.subr.mxu0 0.0
  %199 = vmatpush2.msra.mxu0 0.0
  %200 = vmatprep.subr.mxu0 0.0
  %201 = vmatpush2.msra.mxu0 0.0
  %202 = vmatprep.subr.mxu0 0.0
  %203 = vmatpush2.msra.mxu0 0.0
  %204 = vmatprep.subr.mxu0 0.0
  %205 = vmatpush2.msra.mxu0 0.0
  %206 = vmatprep.subr.mxu0 0.0
  %207 = vmatpush2.msra.mxu0 0.0
  %208 = vmatprep.subr.mxu0 0.0
  %209 = vmatpush2.msra.mxu0 0.0
  %210 = vmatprep.subr.mxu0 0.0
  %211 = vmatpush2.msra.mxu0 0.0
  %212 = vmatprep.subr.mxu0 0.0
  %213 = vmatpush2.msra.mxu0 0.0
  %214 = vmatprep.subr.mxu0 0.0
  %215 = vmatpush2.msra.mxu0 0.0
  %216 = vmatprep.mubr.f32.mxu0 0.0
  %217 = vmatmul.mubr.f32.gmra.mxu0 %v79
  %v218 = vpop.f32.mrf.mxu0
  %v219 = vadd.f32 0.0, %v218
  %v220 = vpop.f32.mrf.mxu0
  %v221 = vadd.f32 0.0, %v220
  %222 = vdwg.mxu0
  %v223 = vld [vmem:[#allocation2] sm:$0xff]
  %v224 = vadd.f32 %v148, %v150
  %v225 = vadd.f32 %v224, %v219
  %v226 = vadd.f32 %v225, %v221
  %227 = vadd.xlane.f32.xlu0 %v226
  %v228 = vpop.xlane.xlu0 %227
  %v229 = vadd.f32 %v223, %v228
  %vm230 = vcmask 7168
  %231 = vst.msk [vmem:[#allocation2] sm:$0xff] %vm230, %v229
  %v232 = vld [vmem:[#allocation3] sm:$0xff]
  %v233 = vmul.f32 %v148, %v148
  %v234 = vmul.f32 %v150, %v150
  %v235 = vmul.f32 %v219, %v219
  %v236 = vmul.f32 %v221, %v221
  %v237 = vadd.f32 %v233, %v234
  %v238 = vadd.f32 %v237, %v235
  %v239 = vadd.f32 %v238, %v236
  %240 = vadd.xlane.f32.xlu0 %v239
  %v241 = vpop.xlane.xlu0 %240
  %v242 = vadd.f32 %v232, %v241
  %243 = vst.msk [vmem:[#allocation3] sm:$0xff] %vm230, %v242
  // Predicated region
  $region22: #{wide_resnet_forward.6} parent=0 // pred_check
    %p244 = pneg %p39
  $region23: #{wide_resnet_forward.6} parent=0 // pred_check_branch
    %246 = sbr.rel (%p244) target = $region25
  $region24: #{wide_resnet_forward.6} parent=0 // pred_region
    %v247 = vld [vmem:[#allocation2] sm:$0xff]
    %v248 = vld [vmem:[#allocation3] sm:$0xff]
    %250 = vrot.lane.b32.xlu0 %v248, 1
    %v251 = vpop.permute.xlu0 %250
    %v253 = vsel %vm230, %v247, %v251
    %vm254 = vcmask 15360
    %255 = vst.msk [vmem:[%s4] sm:$0xff] %vm254, %v253
  $region25: #{wide_resnet_forward.6} parent=0 // pred_fallthru
    _
  // Predicated region
  $region26: #{wide_resnet_forward.6} parent=0 // pred_check
    _
  $region27: #{wide_resnet_forward.6} parent=0 // pred_check_branch
    %257 = sbr.rel (0) target = $region29
  $region28: #{wide_resnet_forward.6} parent=0 // pred_region
    _
  $region29: #{wide_resnet_forward.6} parent=0 // pred_fallthru
    _
  // Predicated region
  $region30: #{wide_resnet_forward.6} parent=0 // pred_check
    _
  $region31: #{wide_resnet_forward.6} parent=0 // pred_check_branch
    %259 = sbr.rel (0) target = $region33
  $region32: #{wide_resnet_forward.6} parent=0 // pred_region
    _
  $region33: #{wide_resnet_forward.6} parent=0 // pred_fallthru
    _

// kernel: wide_resnet_forward.7
$region0: #{wide_resnet_forward.7}
  #allocation0 [shape = 'u32[]', space=smem, size = 0x4, offset = 0x4, fixed_abs, tag = 'smem constant byte address 0x4 - core index']
  #allocation1 [shape = 'u32[144,128]{1,0:T(1,128)}', space=vmem, size = 0x12000, scoped, tag = 'internal scratch']
  #allocation2 [shape = 'f32[8,1]{1,0:T(8,128)}', space=vmem, size = 0x1000, scoped, tag = 'scratch operand']
  #allocation3 [shape = 'f32[8,1]{1,0:T(8,128)}', space=vmem, size = 0x1000, scoped, tag = 'scratch operand']
  %s0 = inlined_call_operand.vmem [shape: bf16[8,512], index: 0, kind: input, shape index: {}]
  %s1 = inlined_call_operand.vmem [shape: f32[8,1], index: 1, kind: input, shape index: {}]
  %s2 = inlined_call_operand.vmem [shape: f32[8,1], index: 2, kind: input, shape index: {}]
  %s3 = inlined_call_operand.vmem [shape: f32[8,8], index: 3, kind: input, shape index: {}]
  %s4 = inlined_call_operand.vmem [shape: f32[8,1], index: 4, kind: input, shape index: {}]
  %s5 = inlined_call_operand.vmem [shape: f32[8,1], index: 5, kind: input, shape index: {}]
  %s6 = inlined_call_operand.vmem [shape: f32[8,8], index: 6, kind: input, shape index: {}]
  %s7 = inlined_call_operand.vmem [shape: bf16[8,512], index: 7, kind: output, shape index: {0}]
  %s8 = inlined_call_operand.vmem [shape: f32[1,8,2], index: 8, kind: output, shape index: {1}]
  %9 = xla_tuple %s7, %s8
  %s10 = sld [smem:[#allocation0]]
  $region54: #{wide_resnet_forward.7} parent=0
    _
  %s12 = ssub.s32 1, %s10
  %s13 = scalar_select 0, %s12, %s10
  // Predicated region
  $region2: #{wide_resnet_forward.7} parent=0 // pred_check
    _
  $region3: #{wide_resnet_forward.7} parent=0 // pred_check_branch
    %15 = sbr.rel (0) target = $region5
  $region4: #{wide_resnet_forward.7} parent=0 // pred_region
    %s16 = sadd.s32 0, 0
    %s17 = smul.u32 4, %s16
    %p18 = scmp.lt.s32.totalorder %s17, 3
    %s19 = scalar_select %p18, %s17, 3
    %s20 = smul.addr %s19, 4
    %s21 = scalar_lea.vmem %s0, %s20
    %s22 = sadd.s32 0, 0
    %s23 = smul.u32 4, %s22
  $region5: #{wide_resnet_forward.7} parent=0 // pred_fallthru
    _
  // Predicated region
  $region6: #{wide_resnet_forward.7} parent=0 // pred_check
    _
  $region7: #{wide_resnet_forward.7} parent=0 // pred_check_branch
    %25 = sbr.rel (0) target = $region9
  $region8: #{wide_resnet_forward.7} parent=0 // pred_region
    _
  $region9: #{wide_resnet_forward.7} parent=0 // pred_fallthru
    _
  // Predicated region
  $region10: #{wide_resnet_forward.7} parent=0 // pred_check
    _
  $region11: #{wide_resnet_forward.7} parent=0 // pred_check_branch
    %27 = sbr.rel (0) target = $region13
  $region12: #{wide_resnet_forward.7} parent=0 // pred_region
    _
  $region13: #{wide_resnet_forward.7} parent=0 // pred_fallthru
    _
  // Predicated region
  $region14: #{wide_resnet_forward.7} parent=0 // pred_check
    _
  $region15: #{wide_resnet_forward.7} parent=0 // pred_check_branch
    %29 = sbr.rel (0) target = $region17
  $region16: #{wide_resnet_forward.7} parent=0 // pred_region
    _
  $region17: #{wide_resnet_forward.7} parent=0 // pred_fallthru
    _
  // Predicated region
  $region18: #{wide_resnet_forward.7} parent=0 // pred_check
    _
  $region19: #{wide_resnet_forward.7} parent=0 // pred_check_branch
    %31 = sbr.rel (0) target = $region21
  $region20: #{wide_resnet_forward.7} parent=0 // pred_region
    _
  $region21: #{wide_resnet_forward.7} parent=0 // pred_fallthru
    _
  // Predicated region
  $region22: #{wide_resnet_forward.7} parent=0 // pred_check
    _
  $region23: #{wide_resnet_forward.7} parent=0 // pred_check_branch
    %33 = sbr.rel (0) target = $region25
  $region24: #{wide_resnet_forward.7} parent=0 // pred_region
    _
  $region25: #{wide_resnet_forward.7} parent=0 // pred_fallthru
    _
  // Predicated region
  $region26: #{wide_resnet_forward.7} parent=0 // pred_check
    _
  $region27: #{wide_resnet_forward.7} parent=0 // pred_check_branch
    %35 = sbr.rel (0) target = $region29
  $region28: #{wide_resnet_forward.7} parent=0 // pred_region
    _
  $region29: #{wide_resnet_forward.7} parent=0 // pred_fallthru
    _
  %s36 = sadd.s32 0, 0
  %s37 = smul.u32 4, %s36
  %p38 = scmp.lt.s32.totalorder %s37, 3
  %s39 = scalar_select %p38, %s37, 3
  %s40 = smul.addr %s39, 4
  %s41 = scalar_lea.vmem %s0, %s40
  %s42 = sadd.s32 0, 0
  %s43 = smul.u32 4, %s42
  %p44 = scmp.lt.s32.totalorder %s43, 3
  %s45 = scalar_select %p44, %s43, 3
  %s46 = smul.addr %s45, 4
  %s47 = scalar_lea.vmem %s7, %s46
  %s48 = sadd.s32 0, 0
  %s49 = smul.u32 4, %s48
  %p50 = scmp.lt.s32.totalorder %s49, 3
  %s51 = scalar_select %p50, %s49, 3
  %s52 = smul.addr %s51, 4
  %s53 = scalar_lea.vmem %s0, %s52
  %s54 = sadd.s32 0, 0
  %s55 = smul.u32 4, %s54
  %s56 = sadd.s32 0, 0
  %s57 = smul.u32 4, %s56
  %p58 = scmp.lt.s32.totalorder %s57, 3
  %s59 = scalar_select %p58, %s57, 3
  %s60 = smul.addr %s59, 4
  %s61 = scalar_lea.vmem %s7, %s60
  %s62 = sadd.s32 0, 0
  %s63 = smul.u32 4, %s62
  %p64 = scmp.eq.s32.totalorder 0, 0
  // Predicated region
  $region30: #{wide_resnet_forward.7} parent=0 // pred_check
    %p65 = pneg %p64
  $region31: #{wide_resnet_forward.7} parent=0 // pred_check_branch
    %67 = sbr.rel (%p65) target = $region33
  $region32: #{wide_resnet_forward.7} parent=0 // pred_region
    %vm68 = vcmask 7168
    %69 = vst.msk [vmem:[#allocation2] sm:$0xff] %vm68, 0.0
    %70 = vst.msk [vmem:[#allocation3] sm:$0xff] %vm68, 0.0
  $region33: #{wide_resnet_forward.7} parent=0 // pred_fallthru
    _
  %v71 = vld [vmem:[%s53] sm:$0xff]
  %v72 = vld [vmem:[%s53 + $0x8] sm:$0xff]
  %v73 = vunpack.c.l.bf16 %v71
  %v74 = vunpack.c.h.bf16 %v71
  %v75 = vunpack.c.l.bf16 %v72
  %v76 = vunpack.c.h.bf16 %v72
  %v77 = vld [vmem:[%s1] sm:$0xff]
  %79 = vset.pattern.permute.xlu0 0
  %80 = vperm.xlu0 %79, %v77
  %v81 = vpop.permute.xlu0 %80
  %v83 = vmul.f32 %v73, %v81
  %v84 = vmul.f32 %v74, %v81
  %v85 = vmul.f32 %v75, %v81
  %v86 = vmul.f32 %v76, %v81
  %v87 = vld [vmem:[%s2] sm:$0xff]
  %89 = vset.pattern.permute.xlu0 0
  %90 = vperm.xlu0 %89, %v87
  %v91 = vpop.permute.xlu0 %90
  %v93 = vadd.f32 %v83, %v91
  %v94 = vadd.f32 %v84, %v91
  %v95 = vadd.f32 %v85, %v91
  %v96 = vadd.f32 %v86, %v91
  %v97 = vmax.f32 %v93, 0.0
  %v98 = vmax.f32 %v94, 0.0
  %v99 = vmax.f32 %v95, 0.0
  %v100 = vmax.f32 %v96, 0.0
  %v101 = vld [vmem:[%s3] sm:$0xff]
  %vm102 = vcmask 64512
  %v104 = vsel %vm102, %v101, 0
  %106 = vmatprep.subr.mxu0 0.0
  %107 = vmatpush1.msra.mxu0 0.0
  %108 = vmatprep.subr.mxu0 0.0
  %109 = vmatpush1.msra.mxu0 0.0
  %110 = vmatprep.subr.mxu0 0.0
  %111 = vmatpush1.msra.mxu0 0.0
  %112 = vmatprep.subr.mxu0 0.0
  %113 = vmatpush1.msra.mxu0 0.0
  %114 = vmatprep.subr.mxu0 0.0
  %115 = vmatpush1.msra.mxu0 0.0
  %116 = vmatprep.subr.mxu0 0.0
  %117 = vmatpush1.msra.mxu0 0.0
  %118 = vmatprep.subr.mxu0 0.0
  %119 = vmatpush1.msra.mxu0 0.0
  %120 = vmatprep.subr.mxu0 0.0
  %121 = vmatpush1.msra.mxu0 0.0
  %122 = vmatprep.subr.mxu0 0.0
  %123 = vmatpush1.msra.mxu0 0.0
  %124 = vmatprep.subr.mxu0 0.0
  %125 = vmatpush1.msra.mxu0 0.0
  %126 = vmatprep.subr.mxu0 0.0
  %127 = vmatpush1.msra.mxu0 0.0
  %128 = vmatprep.subr.mxu0 0.0
  %129 = vmatpush1.msra.mxu0 0.0
  %130 = vmatprep.subr.mxu0 0.0
  %131 = vmatpush1.msra.mxu0 0.0
  %132 = vmatprep.subr.mxu0 0.0
  %133 = vmatpush1.msra.mxu0 0.0
  %134 = vmatprep.subr.mxu0 0.0
  %135 = vmatpush1.msra.mxu0 0.0
  %136 = vmatprep.subr.mxu0 %v98
  %137 = vmatpush1.msra.mxu0 %v97
  %138 = vmatprep.subr.mxu0 0.0
  %139 = vmatpush2.msra.mxu0 0.0
  %140 = vmatprep.subr.mxu0 0.0
  %141 = vmatpush2.msra.mxu0 0.0
  %142 = vmatprep.subr.mxu0 0.0
  %143 = vmatpush2.msra.mxu0 0.0
  %144 = vmatprep.subr.mxu0 0.0
  %145 = vmatpush2.msra.mxu0 0.0
  %146 = vmatprep.subr.mxu0 0.0
  %147 = vmatpush2.msra.mxu0 0.0
  %148 = vmatprep.subr.mxu0 0.0
  %149 = vmatpush2.msra.mxu0 0.0
  %150 = vmatprep.subr.mxu0 0.0
  %151 = vmatpush2.msra.mxu0 0.0
  %152 = vmatprep.subr.mxu0 0.0
  %153 = vmatpush2.msra.mxu0 0.0
  %154 = vmatprep.subr.mxu0 0.0
  %155 = vmatpush2.msra.mxu0 0.0
  %156 = vmatprep.subr.mxu0 0.0
  %157 = vmatpush2.msra.mxu0 0.0
  %158 = vmatprep.subr.mxu0 0.0
  %159 = vmatpush2.msra.mxu0 0.0
  %160 = vmatprep.subr.mxu0 0.0
  %161 = vmatpush2.msra.mxu0 0.0
  %162 = vmatprep.subr.mxu0 0.0
  %163 = vmatpush2.msra.mxu0 0.0
  %164 = vmatprep.subr.mxu0 0.0
  %165 = vmatpush2.msra.mxu0 0.0
  %166 = vmatprep.subr.mxu0 0.0
  %167 = vmatpush2.msra.mxu0 0.0
  %168 = vmatprep.subr.mxu0 0.0
  %169 = vmatpush2.msra.mxu0 0.0
  %170 = vmatprep.mubr.f32.mxu0 0.0
  %171 = vmatmul.mubr.f32.gmra.mxu0 %v104
  %v172 = vpop.f32.mrf.mxu0
  %v173 = vadd.f32 0.0, %v172
  %v174 = vpop.f32.mrf.mxu0
  %v175 = vadd.f32 0.0, %v174
  %176 = vdwg.mxu0
  %177 = vmatprep.subr.mxu0 0.0
  %178 = vmatpush1.msra.mxu0 0.0
  %179 = vmatprep.subr.mxu0 0.0
  %180 = vmatpush1.msra.mxu0 0.0
  %181 = vmatprep.subr.mxu0 0.0
  %182 = vmatpush1.msra.mxu0 0.0
  %183 = vmatprep.subr.mxu0 0.0
  %184 = vmatpush1.msra.mxu0 0.0
  %185 = vmatprep.subr.mxu0 0.0
  %186 = vmatpush1.msra.mxu0 0.0
  %187 = vmatprep.subr.mxu0 0.0
  %188 = vmatpush1.msra.mxu0 0.0
  %189 = vmatprep.subr.mxu0 0.0
  %190 = vmatpush1.msra.mxu0 0.0
  %191 = vmatprep.subr.mxu0 0.0
  %192 = vmatpush1.msra.mxu0 0.0
  %193 = vmatprep.subr.mxu0 0.0
  %194 = vmatpush1.msra.mxu0 0.0
  %195 = vmatprep.subr.mxu0 0.0
  %196 = vmatpush1.msra.mxu0 0.0
  %197 = vmatprep.subr.mxu0 0.0
  %198 = vmatpush1.msra.mxu0 0.0
  %199 = vmatprep.subr.mxu0 0.0
  %200 = vmatpush1.msra.mxu0 0.0
  %201 = vmatprep.subr.mxu0 0.0
  %202 = vmatpush1.msra.mxu0 0.0
  %203 = vmatprep.subr.mxu0 0.0
  %204 = vmatpush1.msra.mxu0 0.0
  %205 = vmatprep.subr.mxu0 0.0
  %206 = vmatpush1.msra.mxu0 0.0
  %207 = vmatprep.subr.mxu0 %v100
  %208 = vmatpush1.msra.mxu0 %v99
  %209 = vmatprep.subr.mxu0 0.0
  %210 = vmatpush2.msra.mxu0 0.0
  %211 = vmatprep.subr.mxu0 0.0
  %212 = vmatpush2.msra.mxu0 0.0
  %213 = vmatprep.subr.mxu0 0.0
  %214 = vmatpush2.msra.mxu0 0.0
  %215 = vmatprep.subr.mxu0 0.0
  %216 = vmatpush2.msra.mxu0 0.0
  %217 = vmatprep.subr.mxu0 0.0
  %218 = vmatpush2.msra.mxu0 0.0
  %219 = vmatprep.subr.mxu0 0.0
  %220 = vmatpush2.msra.mxu0 0.0
  %221 = vmatprep.subr.mxu0 0.0
  %222 = vmatpush2.msra.mxu0 0.0
  %223 = vmatprep.subr.mxu0 0.0
  %224 = vmatpush2.msra.mxu0 0.0
  %225 = vmatprep.subr.mxu0 0.0
  %226 = vmatpush2.msra.mxu0 0.0
  %227 = vmatprep.subr.mxu0 0.0
  %228 = vmatpush2.msra.mxu0 0.0
  %229 = vmatprep.subr.mxu0 0.0
  %230 = vmatpush2.msra.mxu0 0.0
  %231 = vmatprep.subr.mxu0 0.0
  %232 = vmatpush2.msra.mxu0 0.0
  %233 = vmatprep.subr.mxu0 0.0
  %234 = vmatpush2.msra.mxu0 0.0
  %235 = vmatprep.subr.mxu0 0.0
  %236 = vmatpush2.msra.mxu0 0.0
  %237 = vmatprep.subr.mxu0 0.0
  %238 = vmatpush2.msra.mxu0 0.0
  %239 = vmatprep.subr.mxu0 0.0
  %240 = vmatpush2.msra.mxu0 0.0
  %241 = vmatprep.mubr.f32.mxu0 0.0
  %242 = vmatmul.mubr.f32.gmra.mxu0 %v104
  %v243 = vpop.f32.mrf.mxu0
  %v244 = vadd.f32 0.0, %v243
  %v245 = vpop.f32.mrf.mxu0
  %v246 = vadd.f32 0.0, %v245
  %247 = vdwg.mxu0
  %v248 = vld [vmem:[%s4] sm:$0xff]
  %250 = vset.pattern.permute.xlu0 0
  %251 = vperm.xlu0 %250, %v248
  %v252 = vpop.permute.xlu0 %251
  %v254 = vmul.f32 %v173, %v252
  %v255 = vmul.f32 %v175, %v252
  %v256 = vmul.f32 %v244, %v252
  %v257 = vmul.f32 %v246, %v252
  %v258 = vld [vmem:[%s5] sm:$0xff]
  %260 = vset.pattern.permute.xlu0 0
  %261 = vperm.xlu0 %260, %v258
  %v262 = vpop.permute.xlu0 %261
  %v264 = vadd.f32 %v254, %v262
  %v265 = vadd.f32 %v255, %v262
  %v266 = vadd.f32 %v256, %v262
  %v267 = vadd.f32 %v257, %v262
  %v268 = vmax.f32 %v264, 0.0
  %v269 = vmax.f32 %v265, 0.0
  %v270 = vmax.f32 %v266, 0.0
  %v271 = vmax.f32 %v267, 0.0
  %v272 = vld [vmem:[%s6] sm:$0xff]
  %v274 = vsel %vm102, %v272, 0
  %276 = vmatprep.subr.mxu0 0.0
  %277 = vmatpush1.msra.mxu0 0.0
  %278 = vmatprep.subr.mxu0 0.0
  %279 = vmatpush1.msra.mxu0 0.0
  %280 = vmatprep.subr.mxu0 0.0
  %281 = vmatpush1.msra.mxu0 0.0
  %282 = vmatprep.subr.mxu0 0.0
  %283 = vmatpush1.msra.mxu0 0.0
  %284 = vmatprep.subr.mxu0 0.0
  %285 = vmatpush1.msra.mxu0 0.0
  %286 = vmatprep.subr.mxu0 0.0
  %287 = vmatpush1.msra.mxu0 0.0
  %288 = vmatprep.subr.mxu0 0.0
  %289 = vmatpush1.msra.mxu0 0.0
  %290 = vmatprep.subr.mxu0 0.0
  %291 = vmatpush1.msra.mxu0 0.0
  %292 = vmatprep.subr.mxu0 0.0
  %293 = vmatpush1.msra.mxu0 0.0
  %294 = vmatprep.subr.mxu0 0.0
  %295 = vmatpush1.msra.mxu0 0.0
  %296 = vmatprep.subr.mxu0 0.0
  %297 = vmatpush1.msra.mxu0 0.0
  %298 = vmatprep.subr.mxu0 0.0
  %299 = vmatpush1.msra.mxu0 0.0
  %300 = vmatprep.subr.mxu0 0.0
  %301 = vmatpush1.msra.mxu0 0.0
  %302 = vmatprep.subr.mxu0 0.0
  %303 = vmatpush1.msra.mxu0 0.0
  %304 = vmatprep.subr.mxu0 0.0
  %305 = vmatpush1.msra.mxu0 0.0
  %306 = vmatprep.subr.mxu0 %v269
  %307 = vmatpush1.msra.mxu0 %v268
  %308 = vmatprep.subr.mxu0 0.0
  %309 = vmatpush2.msra.mxu0 0.0
  %310 = vmatprep.subr.mxu0 0.0
  %311 = vmatpush2.msra.mxu0 0.0
  %312 = vmatprep.subr.mxu0 0.0
  %313 = vmatpush2.msra.mxu0 0.0
  %314 = vmatprep.subr.mxu0 0.0
  %315 = vmatpush2.msra.mxu0 0.0
  %316 = vmatprep.subr.mxu0 0.0
  %317 = vmatpush2.msra.mxu0 0.0
  %318 = vmatprep.subr.mxu0 0.0
  %319 = vmatpush2.msra.mxu0 0.0
  %320 = vmatprep.subr.mxu0 0.0
  %321 = vmatpush2.msra.mxu0 0.0
  %322 = vmatprep.subr.mxu0 0.0
  %323 = vmatpush2.msra.mxu0 0.0
  %324 = vmatprep.subr.mxu0 0.0
  %325 = vmatpush2.msra.mxu0 0.0
  %326 = vmatprep.subr.mxu0 0.0
  %327 = vmatpush2.msra.mxu0 0.0
  %328 = vmatprep.subr.mxu0 0.0
  %329 = vmatpush2.msra.mxu0 0.0
  %330 = vmatprep.subr.mxu0 0.0
  %331 = vmatpush2.msra.mxu0 0.0
  %332 = vmatprep.subr.mxu0 0.0
  %333 = vmatpush2.msra.mxu0 0.0
  %334 = vmatprep.subr.mxu0 0.0
  %335 = vmatpush2.msra.mxu0 0.0
  %336 = vmatprep.subr.mxu0 0.0
  %337 = vmatpush2.msra.mxu0 0.0
  %338 = vmatprep.subr.mxu0 0.0
  %339 = vmatpush2.msra.mxu0 0.0
  %340 = vmatprep.mubr.f32.mxu0 0.0
  %341 = vmatmul.mubr.f32.gmra.mxu0 %v274
  %v342 = vpop.f32.mrf.mxu0
  %v343 = vadd.f32 %v97, %v342
  %v344 = vpop.f32.mrf.mxu0
  %v345 = vadd.f32 %v98, %v344
  %346 = vdwg.mxu0
  %347 = vmatprep.subr.mxu0 0.0
  %348 = vmatpush1.msra.mxu0 0.0
  %349 = vmatprep.subr.mxu0 0.0
  %350 = vmatpush1.msra.mxu0 0.0
  %351 = vmatprep.subr.mxu0 0.0
  %352 = vmatpush1.msra.mxu0 0.0
  %353 = vmatprep.subr.mxu0 0.0
  %354 = vmatpush1.msra.mxu0 0.0
  %355 = vmatprep.subr.mxu0 0.0
  %356 = vmatpush1.msra.mxu0 0.0
  %357 = vmatprep.subr.mxu0 0.0
  %358 = vmatpush1.msra.mxu0 0.0
  %359 = vmatprep.subr.mxu0 0.0
  %360 = vmatpush1.msra.mxu0 0.0
  %361 = vmatprep.subr.mxu0 0.0
  %362 = vmatpush1.msra.mxu0 0.0
  %363 = vmatprep.subr.mxu0 0.0
  %364 = vmatpush1.msra.mxu0 0.0
  %365 = vmatprep.subr.mxu0 0.0
  %366 = vmatpush1.msra.mxu0 0.0
  %367 = vmatprep.subr.mxu0 0.0
  %368 = vmatpush1.msra.mxu0 0.0
  %369 = vmatprep.subr.mxu0 0.0
  %370 = vmatpush1.msra.mxu0 0.0
  %371 = vmatprep.subr.mxu0 0.0
  %372 = vmatpush1.msra.mxu0 0.0
  %373 = vmatprep.subr.mxu0 0.0
  %374 = vmatpush1.msra.mxu0 0.0
  %375 = vmatprep.subr.mxu0 0.0
  %376 = vmatpush1.msra.mxu0 0.0
  %377 = vmatprep.subr.mxu0 %v271
  %378 = vmatpush1.msra.mxu0 %v270
  %379 = vmatprep.subr.mxu0 0.0
  %380 = vmatpush2.msra.mxu0 0.0
  %381 = vmatprep.subr.mxu0 0.0
  %382 = vmatpush2.msra.mxu0 0.0
  %383 = vmatprep.subr.mxu0 0.0
  %384 = vmatpush2.msra.mxu0 0.0
  %385 = vmatprep.subr.mxu0 0.0
  %386 = vmatpush2.msra.mxu0 0.0
  %387 = vmatprep.subr.mxu0 0.0
  %388 = vmatpush2.msra.mxu0 0.0
  %389 = vmatprep.subr.mxu0 0.0
  %390 = vmatpush2.msra.mxu0 0.0
  %391 = vmatprep.subr.mxu0 0.0
  %392 = vmatpush2.msra.mxu0 0.0
  %393 = vmatprep.subr.mxu0 0.0
  %394 = vmatpush2.msra.mxu0 0.0
  %395 = vmatprep.subr.mxu0 0.0
  %396 = vmatpush2.msra.mxu0 0.0
  %397 = vmatprep.subr.mxu0 0.0
  %398 = vmatpush2.msra.mxu0 0.0
  %399 = vmatprep.subr.mxu0 0.0
  %400 = vmatpush2.msra.mxu0 0.0
  %401 = vmatprep.subr.mxu0 0.0
  %402 = vmatpush2.msra.mxu0 0.0
  %403 = vmatprep.subr.mxu0 0.0
  %404 = vmatpush2.msra.mxu0 0.0
  %405 = vmatprep.subr.mxu0 0.0
  %406 = vmatpush2.msra.mxu0 0.0
  %407 = vmatprep.subr.mxu0 0.0
  %408 = vmatpush2.msra.mxu0 0.0
  %409 = vmatprep.subr.mxu0 0.0
  %410 = vmatpush2.msra.mxu0 0.0
  %411 = vmatprep.mubr.f32.mxu0 0.0
  %412 = vmatmul.mubr.f32.gmra.mxu0 %v274
  %v413 = vpop.f32.mrf.mxu0
  %v414 = vadd.f32 %v99, %v413
  %v415 = vpop.f32.mrf.mxu0
  %v416 = vadd.f32 %v100, %v415
  %417 = vdwg.mxu0
  %v418 = vpack.c.bf16 %v343, %v343
  %v419 = vpack.c.bf16 %v345, %v345
  %v420 = vpack.c.bf16 %v414, %v414
  %v421 = vpack.c.bf16 %v416, %v416
  %v426 = vunpack.c.l.b16 %v418
  %v427 = vunpack.c.l.b16 %v419
  %v428 = vunpack.c.l.b16 %v420
  %v429 = vunpack.c.l.b16 %v421
  %v430 = vpack.c.b16 %v427, %v426
  %v431 = vpack.c.b16 %v429, %v428
  %434 = vst [vmem:[%s61] sm:$0xff] %v430
  %435 = vst [vmem:[%s61 + $0x8] sm:$0xff] %v431
  %v436 = vld [vmem:[#allocation2] sm:$0xff]
  %v437 = vadd.f32 %v343, %v345
  %v438 = vadd.f32 %v437, %v414
  %v439 = vadd.f32 %v438, %v416
  %440 = vadd.xlane.f32.xlu0 %v439
  %v441 = vpop.xlane.xlu0 %440
  %v442 = vadd.f32 %v436, %v441
  %vm443 = vcmask 7168
  %444 = vst.msk [vmem:[#allocation2] sm:$0xff] %vm443, %v442
  %v445 = vld [vmem:[#allocation3] sm:$0xff]
  %v446 = vmul.f32 %v343, %v343
  %v447 = vmul.f32 %v345, %v345
  %v448 = vmul.f32 %v414, %v414
  %v449 = vmul.f32 %v416, %v416
  %v450 = vadd.f32 %v446, %v447
  %v451 = vadd.f32 %v450, %v448
  %v452 = vadd.f32 %v451, %v449
  %453 = vadd.xlane.f32.xlu0 %v452
  %v454 = vpop.xlane.xlu0 %453
  %v455 = vadd.f32 %v445, %v454
  %456 = vst.msk [vmem:[#allocation3] sm:$0xff] %vm443, %v455
  // Predicated region
  $region34: #{wide_resnet_forward.7} parent=0 // pred_check
    %p457 = pneg %p64
  $region35: #{wide_resnet_forward.7} parent=0 // pred_check_branch
    %459 = sbr.rel (%p457) target = $region37
  $region36: #{wide_resnet_forward.7} parent=0 // pred_region
    %v460 = vld [vmem:[#allocation2] sm:$0xff]
    %v461 = vld [vmem:[#allocation3] sm:$0xff]
    %463 = vrot.lane.b32.xlu0 %v461, 1
    %v464 = vpop.permute.xlu0 %463
    %v466 = vsel %vm443, %v460, %v464
    %vm467 = vcmask 15360
    %468 = vst.msk [vmem:[%s8] sm:$0xff] %vm467, %v466
  $region37: #{wide_resnet_forward.7} parent=0 // pred_fallthru
    _
  %s469 = sadd.s32 0, 0
  %s470 = smul.u32 4, %s469
  %p471 = scmp.lt.s32.totalorder %s470, 3
  %s472 = scalar_select %p471, %s470, 3
  %s473 = smul.addr %s472, 4
  %s474 = scalar_lea.vmem %s7, %s473
  // Predicated region
  $region38: #{wide_resnet_forward.7} parent=0 // pred_check
    _
  $region39: #{wide_resnet_forward.7} parent=0 // pred_check_branch
    %476 = sbr.rel (0) target = $region41
  $region40: #{wide_resnet_forward.7} parent=0 // pred_region
    %s477 = sadd.s32 0, 0
    %s478 = smul.u32 4, %s477
  $region41: #{wide_resnet_forward.7} parent=0 // pred_fallthru
    _
  // Predicated region
  $region42: #{wide_resnet_forward.7} parent=0 // pred_check
    _
  $region43: #{wide_resnet_forward.7} parent=0 // pred_check_branch
    %480 = sbr.rel (0) target = $region45
  $region44: #{wide_resnet_forward.7} parent=0 // pred_region
    _
  $region45: #{wide_resnet_forward.7} parent=0 // pred_fallthru
    _
  // Predicated region
  $region46: #{wide_resnet_forward.7} parent=0 // pred_check
    _
  $region47: #{wide_resnet_forward.7} parent=0 // pred_check_branch
    %482 = sbr.rel (0) target = $region49
  $region48: #{wide_resnet_forward.7} parent=0 // pred_region
    %s483 = sadd.s32 0, 0
    %s484 = smul.u32 4, %s483
    %p485 = scmp.lt.s32.totalorder %s484, 3
    %s486 = scalar_select %p485, %s484, 3
    %s487 = smul.addr %s486, 4
    %s488 = scalar_lea.vmem %s7, %s487
  $region49: #{wide_resnet_forward.7} parent=0 // pred_fallthru
    _
  // Predicated region
  $region50: #{wide_resnet_forward.7} parent=0 // pred_check
    _
  $region51: #{wide_resnet_forward.7} parent=0 // pred_check_branch
    %490 = sbr.rel (0) target = $region53
  $region52: #{wide_resnet_forward.7} parent=0 // pred_region
    _
  $region53: #{wide_resnet_forward.7} parent=0 // pred_fallthru
    _

// kernel: wide_resnet_forward.8
$region0: #{wide_resnet_forward.8}
  #allocation0 [shape = 'u32[]', space=smem, size = 0x4, offset = 0x4, fixed_abs, tag = 'smem constant byte address 0x4 - core index']
  #allocation1 [shape = 'u32[144,128]{1,0:T(1,128)}', space=vmem, size = 0x12000, scoped, tag = 'internal scratch']
  #allocation2 [shape = 'f32[16,1]{1,0:T(8,128)}', space=vmem, size = 0x2000, scoped, tag = 'scratch operand']
  #allocation3 [shape = 'f32[16,1]{1,0:T(8,128)}', space=vmem, size = 0x2000, scoped, tag = 'scratch operand']
  %s0 = inlined_call_operand.vmem [shape: bf16[8,128], index: 0, kind: input, shape index: {}]
  %s1 = inlined_call_operand.vmem [shape: f32[8,1], index: 1, kind: input, shape index: {}]
  %s2 = inlined_call_operand.vmem [shape: f32[8,1], index: 2, kind: input, shape index: {}]
  %s3 = inlined_call_operand.vmem [shape: f32[16,8], index: 3, kind: input, shape index: {}]
  %s4 = inlined_call_operand.vmem [shape: f32[1,16,2], index: 4, kind: output, shape index: {}]
  %s5 = sld [smem:[#allocation0]]
  $region34: #{wide_resnet_forward.8} parent=0
    _
  %s7 = ssub.s32 1, %s5
  %s8 = scalar_select 0, %s7, %s5
  // Predicated region
  $region2: #{wide_resnet_forward.8} parent=0 // pred_check
    _
  $region3: #{wide_resnet_forward.8} parent=0 // pred_check_branch
    %10 = sbr.rel (0) target = $region5
  $region4: #{wide_resnet_forward.8} parent=0 // pred_region
    %s11 = sadd.s32 0, 0
    %p12 = scmp.lt.s32.totalorder %s11, 0
    %s13 = scalar_select %p12, %s11, 0
    %s14 = smul.addr %s13, 4
    %s15 = scalar_lea.vmem %s0, %s14
    %s16 = sadd.s32 0, 0
  $region5: #{wide_resnet_forward.8} parent=0 // pred_fallthru
    _
  // Predicated region
  $region6: #{wide_resnet_forward.8} parent=0 // pred_check
    _
  $region7: #{wide_resnet_forward.8} parent=0 // pred_check_branch
    %18 = sbr.rel (0) target = $region9
  $region8: #{wide_resnet_forward.8} parent=0 // pred_region
    _
  $region9: #{wide_resnet_forward.8} parent=0 // pred_fallthru
    _
  // Predicated region
  $region10: #{wide_resnet_forward.8} parent=0 // pred_check
    _
  $region11: #{wide_resnet_forward.8} parent=0 // pred_check_branch
    %20 = sbr.rel (0) target = $region13
  $region12: #{wide_resnet_forward.8} parent=0 // pred_region
    _
  $region13: #{wide_resnet_forward.8} parent=0 // pred_fallthru
    _
  // Predicated region
  $region14: #{wide_resnet_forward.8} parent=0 // pred_check
    _
  $region15: #{wide_resnet_forward.8} parent=0 // pred_check_branch
    %22 = sbr.rel (0) target = $region17
  $region16: #{wide_resnet_forward.8} parent=0 // pred_region
    _
  $region17: #{wide_resnet_forward.8} parent=0 // pred_fallthru
    _
  %s23 = sadd.s32 0, 0
  %p24 = scmp.lt.s32.totalorder %s23, 0
  %s25 = scalar_select %p24, %s23, 0
  %s26 = smul.addr %s25, 4
  %s27 = scalar_lea.vmem %s0, %s26
  %s28 = sadd.s32 0, 0
  %p29 = scmp.lt.s32.totalorder %s28, 0
  %s30 = scalar_select %p29, %s28, 0
  %s31 = smul.addr %s30, 4
  %s32 = scalar_lea.vmem %s0, %s31
  %s33 = sadd.s32 0, 0
  %p34 = scmp.eq.s32.totalorder 0, 0
  // Predicated region
  $region18: #{wide_resnet_forward.8} parent=0 // pred_check
    %p35 = pneg %p34
  $region19: #{wide_resnet_forward.8} parent=0 // pred_check_branch
    %37 = sbr.rel (%p35) target = $region21
  $region20: #{wide_resnet_forward.8} parent=0 // pred_region
    %vm38 = vcmask 7168
    %39 = vst.msk [vmem:[#allocation2] sm:$0xff] %vm38, 0.0
    %40 = vst.msk [vmem:[#allocation2 + $0x8] sm:$0xff] %vm38, 0.0
    %41 = vst.msk [vmem:[#allocation3] sm:$0xff] %vm38, 0.0
    %42 = vst.msk [vmem:[#allocation3 + $0x8] sm:$0xff] %vm38, 0.0
  $region21: #{wide_resnet_forward.8} parent=0 // pred_fallthru
    _
  %v43 = vld [vmem:[%s32] sm:$0xf]
  %v44 = vunpack.c.l.bf16 %v43
  %v45 = vld [vmem:[%s1] sm:$0xff]
  %47 = vset.pattern.permute.xlu0 0
  %48 = vperm.xlu0 %47, %v45
  %v49 = vpop.permute.xlu0 %48
  %v51 = vmul.f32 %v44, %v49
  %v52 = vld [vmem:[%s2] sm:$0xff]
  %54 = vset.pattern.permute.xlu0 0
  %55 = vperm.xlu0 %54, %v52
  %v56 = vpop.permute.xlu0 %55
  %v58 = vadd.f32 %v51, %v56
  %v59 = vmax.f32 %v58, 0.0
  %v60 = vld [vmem:[%s3] sm:$0xff]
  %v61 = vld [vmem:[%s3 + $0x8] sm:$0xff]
  %vm62 = vcmask 64512
  %v64 = vsel %vm62, %v60, 0
  %v67 = vsel %vm62, %v61, 0
  %69 = vmatprep.subr.mxu0 0.0
  %70 = vmatpush1.msra.mxu0 0.0
  %71 = vmatprep.subr.mxu0 0.0
  %72 = vmatpush1.msra.mxu0 0.0
  %73 = vmatprep.subr.mxu0 0.0
  %74 = vmatpush1.msra.mxu0 0.0
  %75 = vmatprep.subr.mxu0 0.0
  %76 = vmatpush1.msra.mxu0 0.0
  %77 = vmatprep.subr.mxu0 0.0
  %78 = vmatpush1.msra.mxu0 0.0
  %79 = vmatprep.subr.mxu0 0.0
  %80 = vmatpush1.msra.mxu0 0.0
  %81 = vmatprep.subr.mxu0 0.0
  %82 = vmatpush1.msra.mxu0 0.0
  %83 = vmatprep.subr.mxu0 0.0
  %84 = vmatpush1.msra.mxu0 0.0
  %85 = vmatprep.subr.mxu0 0.0
  %86 = vmatpush1.msra.mxu0 0.0
  %87 = vmatprep.subr.mxu0 0.0
  %88 = vmatpush1.msra.mxu0 0.0
  %89 = vmatprep.subr.mxu0 0.0
  %90 = vmatpush1.msra.mxu0 0.0
  %91 = vmatprep.subr.mxu0 0.0
  %92 = vmatpush1.msra.mxu0 0.0
  %93 = vmatprep.subr.mxu0 0.0
  %94 = vmatpush1.msra.mxu0 0.0
  %95 = vmatprep.subr.mxu0 0.0
  %96 = vmatpush1.msra.mxu0 0.0
  %97 = vmatprep.subr.mxu0 0.0
  %98 = vmatpush1.msra.mxu0 0.0
  %99 = vmatprep.subr.mxu0 0.0
  %100 = vmatpush1.msra.mxu0 %v59
  %101 = vmatprep.subr.mxu0 0.0
  %102 = vmatpush2.msra.mxu0 0.0
  %103 = vmatprep.subr.mxu0 0.0
  %104 = vmatpush2.msra.mxu0 0.0
  %105 = vmatprep.subr.mxu0 0.0
  %106 = vmatpush2.msra.mxu0 0.0
  %107 = vmatprep.subr.mxu0 0.0
  %108 = vmatpush2.msra.mxu0 0.0
  %109 = vmatprep.subr.mxu0 0.0
  %110 = vmatpush2.msra.mxu0 0.0
  %111 = vmatprep.subr.mxu0 0.0
  %112 = vmatpush2.msra.mxu0 0.0
  %113 = vmatprep.subr.mxu0 0.0
  %114 = vmatpush2.msra.mxu0 0.0
  %115 = vmatprep.subr.mxu0 0.0
  %116 = vmatpush2.msra.mxu0 0.0
  %117 = vmatprep.subr.mxu0 0.0
  %118 = vmatpush2.msra.mxu0 0.0
  %119 = vmatprep.subr.mxu0 0.0
  %120 = vmatpush2.msra.mxu0 0.0
  %121 = vmatprep.subr.mxu0 0.0
  %122 = vmatpush2.msra.mxu0 0.0
  %123 = vmatprep.subr.mxu0 0.0
  %124 = vmatpush2.msra.mxu0 0.0
  %125 = vmatprep.subr.mxu0 0.0
  %126 = vmatpush2.msra.mxu0 0.0
  %127 = vmatprep.subr.mxu0 0.0
  %128 = vmatpush2.msra.mxu0 0.0
  %129 = vmatprep.subr.mxu0 0.0
  %130 = vmatpush2.msra.mxu0 0.0
  %131 = vmatprep.subr.mxu0 0.0
  %132 = vmatpush2.msra.mxu0 0.0
  %133 = vmatprep.mubr.f32.mxu0 0.0
  %134 = vmatmul.mubr.f32.gmra.mxu0 %v64
  %v135 = vpop.f32.mrf.mxu0
  %v136 = vadd.f32 0.0, %v135
  %v137 = vpop.f32.mrf.mxu0
  %138 = vmatprep.mubr.f32.mxu0 0.0
  %139 = vmatmul.mubr.f32.gmra.mxu0 %v67
  %v140 = vpop.f32.mrf.mxu0
  %v141 = vadd.f32 0.0, %v140
  %v142 = vpop.f32.mrf.mxu0
  %143 = vdwg.mxu0
  %v144 = vld [vmem:[#allocation2] sm:$0xff]
  %v145 = vld [vmem:[#allocation2 + $0x8] sm:$0xff]
  %146 = vadd.xlane.f32.xlu0 %v136
  %v147 = vpop.xlane.xlu0 %146
  %148 = vadd.xlane.f32.xlu0 %v141
  %v149 = vpop.xlane.xlu0 %148
  %v150 = vadd.f32 %v144, %v147
  %v151 = vadd.f32 %v145, %v149
  %vm152 = vcmask 7168
  %153 = vst.msk [vmem:[#allocation2] sm:$0xff] %vm152, %v150
  %154 = vst.msk [vmem:[#allocation2 + $0x8] sm:$0xff] %vm152, %v151
  %v155 = vld [vmem:[#allocation3] sm:$0xff]
  %v156 = vld [vmem:[#allocation3 + $0x8] sm:$0xff]
  %v157 = vmul.f32 %v136, %v136
  %v158 = vmul.f32 %v141, %v141
  %159 = vadd.xlane.f32.xlu0 %v157
  %v160 = vpop.xlane.xlu0 %159
  %161 = vadd.xlane.f32.xlu0 %v158
  %v162 = vpop.xlane.xlu0 %161
  %v163 = vadd.f32 %v155, %v160
  %v164 = vadd.f32 %v156, %v162
  %165 = vst.msk [vmem:[#allocation3] sm:$0xff] %vm152, %v163
  %166 = vst.msk [vmem:[#allocation3 + $0x8] sm:$0xff] %vm152, %v164
  // Predicated region
  $region22: #{wide_resnet_forward.8} parent=0 // pred_check
    %p167 = pneg %p34
  $region23: #{wide_resnet_forward.8} parent=0 // pred_check_branch
    %169 = sbr.rel (%p167) target = $region25
  $region24: #{wide_resnet_forward.8} parent=0 // pred_region
    %v170 = vld [vmem:[#allocation2] sm:$0xff]
    %v171 = vld [vmem:[#allocation2 + $0x8] sm:$0xff]
    %v172 = vld [vmem:[#allocation3] sm:$0xff]
    %v173 = vld [vmem:[#allocation3 + $0x8] sm:$0xff]
    %176 = vrot.lane.b32.xlu0 %v172, 1
    %v177 = vpop.permute.xlu0 %176
    %178 = vrot.lane.b32.xlu0 %v173, 1
    %v179 = vpop.permute.xlu0 %178
    %v182 = vsel %vm152, %v170, %v177
    %v183 = vsel %vm152, %v171, %v179
    %vm184 = vcmask 15360
    %185 = vst.msk [vmem:[%s4] sm:$0xff] %vm184, %v182
    %186 = vst.msk [vmem:[%s4 + $0x8] sm:$0xff] %vm184, %v183
  $region25: #{wide_resnet_forward.8} parent=0 // pred_fallthru
    _
  // Predicated region
  $region26: #{wide_resnet_forward.8} parent=0 // pred_check
    _
  $region27: #{wide_resnet_forward.8} parent=0 // pred_check_branch
    %188 = sbr.rel (0) target = $region29
  $region28: #{wide_resnet_forward.8} parent=0 // pred_region
    _
  $region29: #{wide_resnet_forward.8} parent=0 // pred_fallthru
    _
  // Predicated region
  $region30: #{wide_resnet_forward.8} parent=0 // pred_check
    _
  $region31: #{wide_resnet_forward.8} parent=0 // pred_check_branch
    %190 = sbr.rel (0) target = $region33
  $region32: #{wide_resnet_forward.8} parent=0 // pred_region
    _
  $region33: #{wide_resnet_forward.8} parent=0 // pred_fallthru
    _

// kernel: wide_resnet_forward.9
$region0: #{wide_resnet_forward.9}
  #allocation0 [shape = 'u32[]', space=smem, size = 0x4, offset = 0x4, fixed_abs, tag = 'smem constant byte address 0x4 - core index']
  #allocation1 [shape = 'u32[144,128]{1,0:T(1,128)}', space=vmem, size = 0x12000, scoped, tag = 'internal scratch']
  #allocation2 [shape = 'f32[16,1]{1,0:T(8,128)}', space=vmem, size = 0x2000, scoped, tag = 'scratch operand']
  #allocation3 [shape = 'f32[16,1]{1,0:T(8,128)}', space=vmem, size = 0x2000, scoped, tag = 'scratch operand']
  %s0 = inlined_call_operand.vmem [shape: bf16[8,128], index: 0, kind: input, shape index: {}]
  %s1 = inlined_call_operand.vmem [shape: f32[8,1], index: 1, kind: input, shape index: {}]
  %s2 = inlined_call_operand.vmem [shape: f32[8,1], index: 2, kind: input, shape index: {}]
  %s3 = inlined_call_operand.vmem [shape: f32[16,8], index: 3, kind: input, shape index: {}]
  %s4 = inlined_call_operand.vmem [shape: f32[16,1], index: 4, kind: input, shape index: {}]
  %s5 = inlined_call_operand.vmem [shape: f32[16,1], index: 5, kind: input, shape index: {}]
  %s6 = inlined_call_operand.vmem [shape: f32[16,16], index: 6, kind: input, shape index: {}]
  %s7 = inlined_call_operand.vmem [shape: f32[16,8], index: 7, kind: input, shape index: {}]
  %s8 = inlined_call_operand.vmem [shape: bf16[16,128], index: 8, kind: output, shape index: {0}]
  %s9 = inlined_call_operand.hbm [shape: f32[1,16,2], index: 9, kind: output, shape index: {1}]
  %10 = xla_tuple %s8, %s9
  %s11 = sld [smem:[#allocation0]]
  $region58: #{wide_resnet_forward.9} parent=0
    _
  %s13 = ssub.s32 1, %s11
  %s14 = scalar_select 0, %s13, %s11
  $region1: #{wide_resnet_forward.9} parent=0
    #allocation4 [shape = 'u8[8192]{0}', space=vmem, size = 0x2000, scoped, tag = 'output window, operand 1, single buffered']
    #allocation5 [shape = 's32[1]{0}', space=sflag, size = 0x4, scoped, tag = 'scoped memory for wide_resnet_forward.9']
    %15 = vsyncpa [#allocation5], 0
    // Predicated region
    $region2: #{wide_resnet_forward.9} parent=1 // pred_check
      _
    $region3: #{wide_resnet_forward.9} parent=1 // pred_check_branch
      %17 = sbr.rel (0) target = $region5
    $region4: #{wide_resnet_forward.9} parent=1 // pred_region
      %s18 = sadd.s32 0, 0
      %p19 = scmp.lt.s32.totalorder %s18, 0
      %s20 = scalar_select %p19, %s18, 0
      %s21 = smul.addr %s20, 4
      %s22 = scalar_lea.vmem %s0, %s21
      %s23 = sadd.s32 0, 0
    $region5: #{wide_resnet_forward.9} parent=1 // pred_fallthru
      _
    // Predicated region
    $region6: #{wide_resnet_forward.9} parent=1 // pred_check
      _
    $region7: #{wide_resnet_forward.9} parent=1 // pred_check_branch
      %25 = sbr.rel (0) target = $region9
    $region8: #{wide_resnet_forward.9} parent=1 // pred_region
      _
    $region9: #{wide_resnet_forward.9} parent=1 // pred_fallthru
      _
    // Predicated region
    $region10: #{wide_resnet_forward.9} parent=1 // pred_check
      _
    $region11: #{wide_resnet_forward.9} parent=1 // pred_check_branch
      %27 = sbr.rel (0) target = $region13
    $region12: #{wide_resnet_forward.9} parent=1 // pred_region
      _
    $region13: #{wide_resnet_forward.9} parent=1 // pred_fallthru
      _
    // Predicated region
    $region14: #{wide_resnet_forward.9} parent=1 // pred_check
      _
    $region15: #{wide_resnet_forward.9} parent=1 // pred_check_branch
      %29 = sbr.rel (0) target = $region17
    $region16: #{wide_resnet_forward.9} parent=1 // pred_region
      _
    $region17: #{wide_resnet_forward.9} parent=1 // pred_fallthru
      _
    // Predicated region
    $region18: #{wide_resnet_forward.9} parent=1 // pred_check
      _
    $region19: #{wide_resnet_forward.9} parent=1 // pred_check_branch
      %31 = sbr.rel (0) target = $region21
    $region20: #{wide_resnet_forward.9} parent=1 // pred_region
      _
    $region21: #{wide_resnet_forward.9} parent=1 // pred_fallthru
      _
    // Predicated region
    $region22: #{wide_resnet_forward.9} parent=1 // pred_check
      _
    $region23: #{wide_resnet_forward.9} parent=1 // pred_check_branch
      %33 = sbr.rel (0) target = $region25
    $region24: #{wide_resnet_forward.9} parent=1 // pred_region
      _
    $region25: #{wide_resnet_forward.9} parent=1 // pred_fallthru
      _
    // Predicated region
    $region26: #{wide_resnet_forward.9} parent=1 // pred_check
      _
    $region27: #{wide_resnet_forward.9} parent=1 // pred_check_branch
      %35 = sbr.rel (0) target = $region29
    $region28: #{wide_resnet_forward.9} parent=1 // pred_region
      _
    $region29: #{wide_resnet_forward.9} parent=1 // pred_fallthru
      _
    // Predicated region
    $region30: #{wide_resnet_forward.9} parent=1 // pred_check
      _
    $region31: #{wide_resnet_forward.9} parent=1 // pred_check_branch
      %37 = sbr.rel (0) target = $region33
    $region32: #{wide_resnet_forward.9} parent=1 // pred_region
      _
    $region33: #{wide_resnet_forward.9} parent=1 // pred_fallthru
      _
    %s38 = sadd.s32 0, 0
    %p39 = scmp.lt.s32.totalorder %s38, 0
    %s40 = scalar_select %p39, %s38, 0
    %s41 = smul.addr %s40, 4
    %s42 = scalar_lea.vmem %s0, %s41
    %s43 = sadd.s32 0, 0
    %p44 = scmp.lt.s32.totalorder %s43, 0
    %s45 = scalar_select %p44, %s43, 0
    %s46 = smul.addr %s45, 4
    %s47 = scalar_lea.vmem %s8, %s46
    %s48 = sadd.s32 0, 0
    %p49 = scmp.lt.s32.totalorder %s48, 0
    %s50 = scalar_select %p49, %s48, 0
    %s51 = smul.addr %s50, 4
    %s52 = scalar_lea.vmem %s0, %s51
    %s53 = sadd.s32 0, 0
    %s54 = sadd.s32 0, 0
    %p55 = scmp.lt.s32.totalorder %s54, 0
    %s56 = scalar_select %p55, %s54, 0
    %s57 = smul.addr %s56, 4
    %s58 = scalar_lea.vmem %s8, %s57
    %s59 = sadd.s32 0, 0
    %p60 = scmp.eq.s32.totalorder 0, 0
    // Predicated region
    $region34: #{wide_resnet_forward.9} parent=1 // pred_check
      %p61 = pneg %p60
    $region35: #{wide_resnet_forward.9} parent=1 // pred_check_branch
      %63 = sbr.rel (%p61) target = $region37
    $region36: #{wide_resnet_forward.9} parent=1 // pred_region
      %vm64 = vcmask 7168
      %65 = vst.msk [vmem:[#allocation2] sm:$0xff] %vm64, 0.0
      %66 = vst.msk [vmem:[#allocation2 + $0x8] sm:$0xff] %vm64, 0.0
      %67 = vst.msk [vmem:[#allocation3] sm:$0xff] %vm64, 0.0
      %68 = vst.msk [vmem:[#allocation3 + $0x8] sm:$0xff] %vm64, 0.0
    $region37: #{wide_resnet_forward.9} parent=1 // pred_fallthru
      _
    %v69 = vld [vmem:[%s52] sm:$0xf]
    %v70 = vunpack.c.l.bf16 %v69
    %v71 = vld [vmem:[%s1] sm:$0xff]
    %73 = vset.pattern.permute.xlu0 0
    %74 = vperm.xlu0 %73, %v71
    %v75 = vpop.permute.xlu0 %74
    %v77 = vmul.f32 %v70, %v75
    %v78 = vld [vmem:[%s2] sm:$0xff]
    %80 = vset.pattern.permute.xlu0 0
    %81 = vperm.xlu0 %80, %v78
    %v82 = vpop.permute.xlu0 %81
    %v84 = vadd.f32 %v77, %v82
    %v85 = vmax.f32 %v84, 0.0
    %v86 = vld [vmem:[%s3] sm:$0xff]
    %v87 = vld [vmem:[%s3 + $0x8] sm:$0xff]
    %vm88 = vcmask 64512
    %v90 = vsel %vm88, %v86, 0
    %v93 = vsel %vm88, %v87, 0
    %95 = vmatprep.subr.mxu0 0.0
    %96 = vmatpush1.msra.mxu0 0.0
    %97 = vmatprep.subr.mxu0 0.0
    %98 = vmatpush1.msra.mxu0 0.0
    %99 = vmatprep.subr.mxu0 0.0
    %100 = vmatpush1.msra.mxu0 0.0
    %101 = vmatprep.subr.mxu0 0.0
    %102 = vmatpush1.msra.mxu0 0.0
    %103 = vmatprep.subr.mxu0 0.0
    %104 = vmatpush1.msra.mxu0 0.0
    %105 = vmatprep.subr.mxu0 0.0
    %106 = vmatpush1.msra.mxu0 0.0
    %107 = vmatprep.subr.mxu0 0.0
    %108 = vmatpush1.msra.mxu0 0.0
    %109 = vmatprep.subr.mxu0 0.0
    %110 = vmatpush1.msra.mxu0 0.0
    %111 = vmatprep.subr.mxu0 0.0
    %112 = vmatpush1.msra.mxu0 0.0
    %113 = vmatprep.subr.mxu0 0.0
    %114 = vmatpush1.msra.mxu0 0.0
    %115 = vmatprep.subr.mxu0 0.0
    %116 = vmatpush1.msra.mxu0 0.0
    %117 = vmatprep.subr.mxu0 0.0
    %118 = vmatpush1.msra.mxu0 0.0
    %119 = vmatprep.subr.mxu0 0.0
    %120 = vmatpush1.msra.mxu0 0.0
    %121 = vmatprep.subr.mxu0 0.0
    %122 = vmatpush1.msra.mxu0 0.0
    %123 = vmatprep.subr.mxu0 0.0
    %124 = vmatpush1.msra.mxu0 0.0
    %125 = vmatprep.subr.mxu0 0.0
    %126 = vmatpush1.msra.mxu0 %v85
    %127 = vmatprep.subr.mxu0 0.0
    %128 = vmatpush2.msra.mxu0 0.0
    %129 = vmatprep.subr.mxu0 0.0
    %130 = vmatpush2.msra.mxu0 0.0
    %131 = vmatprep.subr.mxu0 0.0
    %132 = vmatpush2.msra.mxu0 0.0
    %133 = vmatprep.subr.mxu0 0.0
    %134 = vmatpush2.msra.mxu0 0.0
    %135 = vmatprep.subr.mxu0 0.0
    %136 = vmatpush2.msra.mxu0 0.0
    %137 = vmatprep.subr.mxu0 0.0
    %138 = vmatpush2.msra.mxu0 0.0
    %139 = vmatprep.subr.mxu0 0.0
    %140 = vmatpush2.msra.mxu0 0.0
    %141 = vmatprep.subr.mxu0 0.0
    %142 = vmatpush2.msra.mxu0 0.0
    %143 = vmatprep.subr.mxu0 0.0
    %144 = vmatpush2.msra.mxu0 0.0
    %145 = vmatprep.subr.mxu0 0.0
    %146 = vmatpush2.msra.mxu0 0.0
    %147 = vmatprep.subr.mxu0 0.0
    %148 = vmatpush2.msra.mxu0 0.0
    %149 = vmatprep.subr.mxu0 0.0
    %150 = vmatpush2.msra.mxu0 0.0
    %151 = vmatprep.subr.mxu0 0.0
    %152 = vmatpush2.msra.mxu0 0.0
    %153 = vmatprep.subr.mxu0 0.0
    %154 = vmatpush2.msra.mxu0 0.0
    %155 = vmatprep.subr.mxu0 0.0
    %156 = vmatpush2.msra.mxu0 0.0
    %157 = vmatprep.subr.mxu0 0.0
    %158 = vmatpush2.msra.mxu0 0.0
    %159 = vmatprep.mubr.f32.mxu0 0.0
    %160 = vmatmul.mubr.f32.gmra.mxu0 %v90
    %v161 = vpop.f32.mrf.mxu0
    %v162 = vadd.f32 0.0, %v161
    %v163 = vpop.f32.mrf.mxu0
    %164 = vmatprep.mubr.f32.mxu0 0.0
    %165 = vmatmul.mubr.f32.gmra.mxu0 %v93
    %v166 = vpop.f32.mrf.mxu0
    %v167 = vadd.f32 0.0, %v166
    %v168 = vpop.f32.mrf.mxu0
    %169 = vdwg.mxu0
    %v170 = vld [vmem:[%s4] sm:$0xff]
    %v171 = vld [vmem:[%s4 + $0x8] sm:$0xff]
    %173 = vset.pattern.permute.xlu0 0
    %174 = vperm.xlu0 %173, %v170
    %v175 = vpop.permute.xlu0 %174
    %178 = vset.pattern.permute.xlu0 0
    %179 = vperm.xlu0 %178, %v171
    %v180 = vpop.permute.xlu0 %179
    %v182 = vmul.f32 %v162, %v175
    %v183 = vmul.f32 %v167, %v180
    %v184 = vld [vmem:[%s5] sm:$0xff]
    %v185 = vld [vmem:[%s5 + $0x8] sm:$0xff]
    %187 = vset.pattern.permute.xlu0 0
    %188 = vperm.xlu0 %187, %v184
    %v189 = vpop.permute.xlu0 %188
    %192 = vset.pattern.permute.xlu0 0
    %193 = vperm.xlu0 %192, %v185
    %v194 = vpop.permute.xlu0 %193
    %v196 = vadd.f32 %v182, %v189
    %v197 = vadd.f32 %v183, %v194
    %v198 = vmax.f32 %v196, 0.0
    %v199 = vmax.f32 %v197, 0.0
    %v200 = vld [vmem:[%s6] sm:$0xff]
    %v201 = vld [vmem:[%s6 + $0x8] sm:$0xff]
    %v202 = vld [vmem:[%s7] sm:$0xff]
    %v203 = vld [vmem:[%s7 + $0x8] sm:$0xff]
    %v205 = vsel %vm88, %v202, 0
    %v208 = vsel %vm88, %v203, 0
    %210 = vmatprep.subr.mxu0 0.0
    %211 = vmatpush1.msra.mxu0 0.0
    %212 = vmatprep.subr.mxu0 0.0
    %213 = vmatpush1.msra.mxu0 0.0
    %214 = vmatprep.subr.mxu0 0.0
    %215 = vmatpush1.msra.mxu0 0.0
    %216 = vmatprep.subr.mxu0 0.0
    %217 = vmatpush1.msra.mxu0 0.0
    %218 = vmatprep.subr.mxu0 0.0
    %219 = vmatpush1.msra.mxu0 0.0
    %220 = vmatprep.subr.mxu0 0.0
    %221 = vmatpush1.msra.mxu0 0.0
    %222 = vmatprep.subr.mxu0 0.0
    %223 = vmatpush1.msra.mxu0 0.0
    %224 = vmatprep.subr.mxu0 0.0
    %225 = vmatpush1.msra.mxu0 0.0
    %226 = vmatprep.subr.mxu0 0.0
    %227 = vmatpush1.msra.mxu0 0.0
    %228 = vmatprep.subr.mxu0 0.0
    %229 = vmatpush1.msra.mxu0 0.0
    %230 = vmatprep.subr.mxu0 0.0
    %231 = vmatpush1.msra.mxu0 0.0
    %232 = vmatprep.subr.mxu0 0.0
    %233 = vmatpush1.msra.mxu0 0.0
    %234 = vmatprep.subr.mxu0 0.0
    %235 = vmatpush1.msra.mxu0 0.0
    %236 = vmatprep.subr.mxu0 0.0
    %237 = vmatpush1.msra.mxu0 0.0
    %238 = vmatprep.subr.mxu0 0.0
    %239 = vmatpush1.msra.mxu0 0.0
    %240 = vmatprep.subr.mxu0 0.0
    %241 = vmatpush1.msra.mxu0 %v85
    %242 = vmatprep.subr.mxu0 0.0
    %243 = vmatpush2.msra.mxu0 0.0
    %244 = vmatprep.subr.mxu0 0.0
    %245 = vmatpush2.msra.mxu0 0.0
    %246 = vmatprep.subr.mxu0 0.0
    %247 = vmatpush2.msra.mxu0 0.0
    %248 = vmatprep.subr.mxu0 0.0
    %249 = vmatpush2.msra.mxu0 0.0
    %250 = vmatprep.subr.mxu0 0.0
    %251 = vmatpush2.msra.mxu0 0.0
    %252 = vmatprep.subr.mxu0 0.0
    %253 = vmatpush2.msra.mxu0 0.0
    %254 = vmatprep.subr.mxu0 0.0
    %255 = vmatpush2.msra.mxu0 0.0
    %256 = vmatprep.subr.mxu0 0.0
    %257 = vmatpush2.msra.mxu0 0.0
    %258 = vmatprep.subr.mxu0 0.0
    %259 = vmatpush2.msra.mxu0 0.0
    %260 = vmatprep.subr.mxu0 0.0
    %261 = vmatpush2.msra.mxu0 0.0
    %262 = vmatprep.subr.mxu0 0.0
    %263 = vmatpush2.msra.mxu0 0.0
    %264 = vmatprep.subr.mxu0 0.0
    %265 = vmatpush2.msra.mxu0 0.0
    %266 = vmatprep.subr.mxu0 0.0
    %267 = vmatpush2.msra.mxu0 0.0
    %268 = vmatprep.subr.mxu0 0.0
    %269 = vmatpush2.msra.mxu0 0.0
    %270 = vmatprep.subr.mxu0 0.0
    %271 = vmatpush2.msra.mxu0 0.0
    %272 = vmatprep.subr.mxu0 0.0
    %273 = vmatpush2.msra.mxu0 0.0
    %274 = vmatprep.mubr.f32.mxu0 0.0
    %275 = vmatmul.mubr.f32.gmra.mxu0 %v205
    %v276 = vpop.f32.mrf.mxu0
    %v277 = vadd.f32 0.0, %v276
    %v278 = vpop.f32.mrf.mxu0
    %279 = vmatprep.mubr.f32.mxu0 0.0
    %280 = vmatmul.mubr.f32.gmra.mxu0 %v208
    %v281 = vpop.f32.mrf.mxu0
    %v282 = vadd.f32 0.0, %v281
    %v283 = vpop.f32.mrf.mxu0
    %284 = vdwg.mxu0
    %vm285 = vcmask 130048
    %v287 = vsel %vm285, %v200, 0
    %v290 = vsel %vm285, %v201, 0
    %292 = vmatprep.subr.mxu0 0.0
    %293 = vmatpush1.msra.mxu0 0.0
    %294 = vmatprep.subr.mxu0 0.0
    %295 = vmatpush1.msra.mxu0 0.0
    %296 = vmatprep.subr.mxu0 0.0
    %297 = vmatpush1.msra.mxu0 0.0
    %298 = vmatprep.subr.mxu0 0.0
    %299 = vmatpush1.msra.mxu0 0.0
    %300 = vmatprep.subr.mxu0 0.0
    %301 = vmatpush1.msra.mxu0 0.0
    %302 = vmatprep.subr.mxu0 0.0
    %303 = vmatpush1.msra.mxu0 0.0
    %304 = vmatprep.subr.mxu0 0.0
    %305 = vmatpush1.msra.mxu0 0.0
    %306 = vmatprep.subr.mxu0 0.0
    %307 = vmatpush1.msra.mxu0 0.0
    %308 = vmatprep.subr.mxu0 0.0
    %309 = vmatpush1.msra.mxu0 0.0
    %310 = vmatprep.subr.mxu0 0.0
    %311 = vmatpush1.msra.mxu0 0.0
    %312 = vmatprep.subr.mxu0 0.0
    %313 = vmatpush1.msra.mxu0 0.0
    %314 = vmatprep.subr.mxu0 0.0
    %315 = vmatpush1.msra.mxu0 0.0
    %316 = vmatprep.subr.mxu0 0.0
    %317 = vmatpush1.msra.mxu0 0.0
    %318 = vmatprep.subr.mxu0 0.0
    %319 = vmatpush1.msra.mxu0 0.0
    %320 = vmatprep.subr.mxu0 0.0
    %321 = vmatpush1.msra.mxu0 %v199
    %322 = vmatprep.subr.mxu0 0.0
    %323 = vmatpush1.msra.mxu0 %v198
    %324 = vmatprep.subr.mxu0 0.0
    %325 = vmatpush2.msra.mxu0 0.0
    %326 = vmatprep.subr.mxu0 0.0
    %327 = vmatpush2.msra.mxu0 0.0
    %328 = vmatprep.subr.mxu0 0.0
    %329 = vmatpush2.msra.mxu0 0.0
    %330 = vmatprep.subr.mxu0 0.0
    %331 = vmatpush2.msra.mxu0 0.0
    %332 = vmatprep.subr.mxu0 0.0
    %333 = vmatpush2.msra.mxu0 0.0
    %334 = vmatprep.subr.mxu0 0.0
    %335 = vmatpush2.msra.mxu0 0.0
    %336 = vmatprep.subr.mxu0 0.0
    %337 = vmatpush2.msra.mxu0 0.0
    %338 = vmatprep.subr.mxu0 0.0
    %339 = vmatpush2.msra.mxu0 0.0
    %340 = vmatprep.subr.mxu0 0.0
    %341 = vmatpush2.msra.mxu0 0.0
    %342 = vmatprep.subr.mxu0 0.0
    %343 = vmatpush2.msra.mxu0 0.0
    %344 = vmatprep.subr.mxu0 0.0
    %345 = vmatpush2.msra.mxu0 0.0
    %346 = vmatprep.subr.mxu0 0.0
    %347 = vmatpush2.msra.mxu0 0.0
    %348 = vmatprep.subr.mxu0 0.0
    %349 = vmatpush2.msra.mxu0 0.0
    %350 = vmatprep.subr.mxu0 0.0
    %351 = vmatpush2.msra.mxu0 0.0
    %352 = vmatprep.subr.mxu0 0.0
    %353 = vmatpush2.msra.mxu0 0.0
    %354 = vmatprep.subr.mxu0 0.0
    %355 = vmatpush2.msra.mxu0 0.0
    %356 = vmatprep.mubr.f32.mxu0 0.0
    %357 = vmatmul.mubr.f32.gmra.mxu0 %v287
    %v358 = vpop.f32.mrf.mxu0
    %v359 = vadd.f32 %v277, %v358
    %v360 = vpop.f32.mrf.mxu0
    %361 = vmatprep.mubr.f32.mxu0 0.0
    %362 = vmatmul.mubr.f32.gmra.mxu0 %v290
    %v363 = vpop.f32.mrf.mxu0
    %v364 = vadd.f32 %v282, %v363
    %v365 = vpop.f32.mrf.mxu0
    %366 = vdwg.mxu0
    %v367 = vpack.c.bf16 %v364, %v359
    %v369 = vunpack.c.l.b16 %v367
    %v370 = vunpack.c.h.b16 %v367
    %v371 = vpack.c.b16 %v369, %v369
    %v372 = vpack.c.b16 %v370, %v370
    %375 = vst [vmem:[%s58] sm:$0xf] %v371
    %376 = vst [vmem:[%s58 + $0x4] sm:$0xf] %v372
    %v377 = vld [vmem:[#allocation2] sm:$0xff]
    %v378 = vld [vmem:[#allocation2 + $0x8] sm:$0xff]
    %379 = vadd.xlane.f32.xlu0 %v359
    %v380 = vpop.xlane.xlu0 %379
    %381 = vadd.xlane.f32.xlu0 %v364
    %v382 = vpop.xlane.xlu0 %381
    %v383 = vadd.f32 %v377, %v380
    %v384 = vadd.f32 %v378, %v382
    %vm385 = vcmask 7168
    %386 = vst.msk [vmem:[#allocation2] sm:$0xff] %vm385, %v383
    %387 = vst.msk [vmem:[#allocation2 + $0x8] sm:$0xff] %vm385, %v384
    %v388 = vld [vmem:[#allocation3] sm:$0xff]
    %v389 = vld [vmem:[#allocation3 + $0x8] sm:$0xff]
    %v390 = vmul.f32 %v359, %v359
    %v391 = vmul.f32 %v364, %v364
    %392 = vadd.xlane.f32.xlu0 %v390
    %v393 = vpop.xlane.xlu0 %392
    %394 = vadd.xlane.f32.xlu0 %v391
    %v395 = vpop.xlane.xlu0 %394
    %v396 = vadd.f32 %v388, %v393
    %v397 = vadd.f32 %v389, %v395
    %398 = vst.msk [vmem:[#allocation3] sm:$0xff] %vm385, %v396
    %399 = vst.msk [vmem:[#allocation3 + $0x8] sm:$0xff] %vm385, %v397
    // Predicated region
    $region38: #{wide_resnet_forward.9} parent=1 // pred_check
      %p400 = pneg %p60
    $region39: #{wide_resnet_forward.9} parent=1 // pred_check_branch
      %402 = sbr.rel (%p400) target = $region41
    $region40: #{wide_resnet_forward.9} parent=1 // pred_region
      %v403 = vld [vmem:[#allocation2] sm:$0xff]
      %v404 = vld [vmem:[#allocation2 + $0x8] sm:$0xff]
      %v405 = vld [vmem:[#allocation3] sm:$0xff]
      %v406 = vld [vmem:[#allocation3 + $0x8] sm:$0xff]
      %409 = vrot.lane.b32.xlu0 %v405, 1
      %v410 = vpop.permute.xlu0 %409
      %411 = vrot.lane.b32.xlu0 %v406, 1
      %v412 = vpop.permute.xlu0 %411
      %v415 = vsel %vm385, %v403, %v410
      %v416 = vsel %vm385, %v404, %v412
      %vm417 = vcmask 15360
      %418 = vst.msk [vmem:[#allocation4] sm:$0xff] %vm417, %v415
      %419 = vst.msk [vmem:[#allocation4 + $0x8] sm:$0xff] %vm417, %v416
    $region41: #{wide_resnet_forward.9} parent=1 // pred_fallthru
      _
    %s420 = sadd.s32 0, 0
    %p421 = scmp.lt.s32.totalorder %s420, 0
    %s422 = scalar_select %p421, %s420, 0
    %s423 = smul.addr %s422, 4
    %s424 = scalar_lea.vmem %s8, %s423
    // Predicated region
    $region42: #{wide_resnet_forward.9} parent=1 // pred_check
      _
    $region43: #{wide_resnet_forward.9} parent=1 // pred_check_branch
      %426 = sbr.rel (0) target = $region45
    $region44: #{wide_resnet_forward.9} parent=1 // pred_region
      %s427 = sadd.s32 0, 0
    $region45: #{wide_resnet_forward.9} parent=1 // pred_fallthru
      _
    // Predicated region
    $region46: #{wide_resnet_forward.9} parent=1 // pred_check
      _
    $region47: #{wide_resnet_forward.9} parent=1 // pred_check_branch
      %429 = sbr.rel (0) target = $region49
    $region48: #{wide_resnet_forward.9} parent=1 // pred_region
      %s431 = ssub.s32 256, 256
      %432 = vsyncadd [#allocation5], %s431
      %s433 = sshll.u32 [#allocation4], 4
      %s434 = int_to_ptr.vmem [resolvable:$true] %s433
      %439 = dma.vmem_to_hbm [thread:$0]  %s434, 256, %s9, [#allocation5], 128, 128, 8
    $region49: #{wide_resnet_forward.9} parent=1 // pred_fallthru
      _
    // Predicated region
    $region50: #{wide_resnet_forward.9} parent=1 // pred_check
      _
    $region51: #{wide_resnet_forward.9} parent=1 // pred_check_branch
      %441 = sbr.rel (0) target = $region53
    $region52: #{wide_resnet_forward.9} parent=1 // pred_region
      %s442 = sadd.s32 0, 0
      %p443 = scmp.lt.s32.totalorder %s442, 0
      %s444 = scalar_select %p443, %s442, 0
      %s445 = smul.addr %s444, 4
      %s446 = scalar_lea.vmem %s8, %s445
    $region53: #{wide_resnet_forward.9} parent=1 // pred_fallthru
      _
    // Predicated region
    $region54: #{wide_resnet_forward.9} parent=1 // pred_check
      _
    $region55: #{wide_resnet_forward.9} parent=1 // pred_check_branch
      %448 = sbr.rel (0) target = $region57
    $region56: #{wide_resnet_forward.9} parent=1 // pred_region
      %449 = dma.done [#allocation5], 256
    $region57: #{wide_resnet_forward.9} parent=1 // pred_fallthru
      _
    %450 = vsyncpa [#allocation5], 1

</llo_original>
